<compile_context>
chip_gen: v7x
topology: tpu7x:2x2x1
jax: 0.10.0
libtpu: 0.0.40
codegen_flags: <defaults>
</compile_context>

<pallas_src>
import functools

import jax
import jax.numpy as jnp
from jax.experimental import pallas as pl
from jax.experimental.pallas import tpu as pltpu


def _round_up(x, m):
    return (x + m - 1) // m * m


def _device_kind():
    try:
        return jax.devices()[0].device_kind.lower()
    except Exception:
        return ""


def _vmem_capacity_bytes():
    try:
        return int(pltpu.get_tpu_info().vmem_capacity_bytes)
    except Exception:
        return 64 << 20  # conservative (v7x per-TC VMEM)


def _use_bf16_gelu():
    # bf16 VPU/EUP only on v6e / v7x; keep GELU in f32 elsewhere (v5e and older).
    kind = _device_kind()
    return ("v6" in kind) or ("v7" in kind)


def _channel_mixer_kernel(depth, tokens_per_image, tile_m, needs_mask, gelu_bf16,
                          tok_ref,     # (TM, C)           bf16  token tile of one image
                          w_emb_ref,   # (C, HP)           bf16
                          b_emb_ref,   # (1, HP)           f32
                          w_mix_ref,   # (depth, HP, HP)   bf16  (BN/bias folded)
                          b_mix_ref,   # (depth, 1, HP)    f32
                          w_head_ref,  # (HP, KP)          f32   (last BN + 1/L mean folded)
                          b_head_ref,  # (1, KP)           f32
                          out_ref,     # (1, KP)           f32
                          acc_ref):    # (8, HP)           f32   per-image per-sublane pooled sums
    t = pl.program_id(1)
    last = pl.num_programs(1) - 1
    act_dtype = jnp.bfloat16 if gelu_bf16 else jnp.float32

    @pl.when(t == 0)
    def _():
        acc_ref[...] = jnp.zeros_like(acc_ref)

    # --- MaxPoolEmbedding (pooling already done in the wrapper): 1x1 conv == token matmul.
    z = jnp.dot(tok_ref[...], w_emb_ref[...],
                preferred_element_type=jnp.float32) + b_emb_ref[...]        # (TM, HP) f32
    # TODO(synk): PyTorch nn.GELU default is the exact erf form; the tanh approximation is used
    # here for robust Mosaic lowering (|diff| ~ 1e-3).
    z = jax.nn.gelu(z.astype(act_dtype), approximate=True)

    # --- ConvChannelMixerLayer x depth (pointwise conv == channel matmul; BN folded away).
    for d in range(depth):                                                  # static unroll
        z = jnp.dot(z.astype(jnp.bfloat16), w_mix_ref[d],
                    preferred_element_type=jnp.float32) + b_mix_ref[d]
        z = jax.nn.gelu(z.astype(act_dtype), approximate=True)

    # --- Per-image global average pool: per-sublane partial sums (pure VPU adds per tile);
    #     the cross-sublane collapse happens once per image in the head block.  1/L is folded
    #     into w_head.
    def partial_sum(zz):
        zf = zz.astype(jnp.float32)
        return jnp.sum(zf.reshape(tile_m // 8, 8, zf.shape[-1]), axis=0)    # (8, HP)

    if needs_mask:
        # Padded rows exist only in the last token tile; gate the compare+select there.
        @pl.when(t == last)
        def _():
            row = t * tile_m + jax.lax.broadcasted_iota(jnp.int32, (tile_m, 1), 0)
            zm = jnp.where(row < tokens_per_image, z, jnp.zeros_like(z))
            acc_ref[...] += partial_sum(zm)

        @pl.when(t != last)
        def _():
            acc_ref[...] += partial_sum(z)
    else:
        acc_ref[...] += partial_sum(z)

    # --- ClassificationHead, emitted once per image on its last token tile.
    @pl.when(t == last)
    def _():
        pooled = jnp.sum(acc_ref[...], axis=0, keepdims=True)               # (1, HP) f32
        out_ref[...] = jnp.dot(pooled, w_head_ref[...],
                               preferred_element_type=jnp.float32) + b_head_ref[...]


def _pool_tokens(x_nchw, patch_size):
    """MaxPool2d(p, p) + NCHW -> (N, Ho*Wo, C) tokens (cheap XLA glue on the small pooled
    tensor; the kernel then streams tokens, not raw pooling windows)."""
    N, C, H, W = x_nchw.shape
    Ho, Wo = H // patch_size, W // patch_size                 # MaxPool2d default: floor
    xc = x_nchw[:, :, :Ho * patch_size, :Wo * patch_size].astype(jnp.float32)
    pooled = xc.reshape(N, C, Ho, patch_size, Wo, patch_size).max(axis=(3, 5))  # (N,C,Ho,Wo)
    tok = pooled.transpose(0, 2, 3, 1).reshape(N, Ho * Wo, C)
    return tok, Ho * Wo


def _fold_and_pad(params, depth, n_tokens, hp, kp):
    """Fold eval-mode BatchNorm + conv bias into the following layer's weights, fold the
    last BN and the 1/(Ho*Wo) mean into the head, then zero-pad channel dims to lane-dense
    multiples of 128 (GELU(0) == 0 keeps padded channels identically zero everywhere)."""
    def pad2(a, r, c):
        return jnp.pad(a, ((0, r - a.shape[0]), (0, c - a.shape[1])))

    s_prev, t_prev = params["s_emb"], params["t_emb"]          # (1, h)
    w_mix_eff, b_mix_eff = [], []
    for d in range(depth):
        w, b = params["w_mix"][d], params["b_mix"][d]
        w_mix_eff.append(s_prev.reshape(-1, 1) * w)            # diag(s_prev) @ w
        b_mix_eff.append(t_prev @ w + b)
        s_prev, t_prev = params["s_mix"][d], params["t_mix"][d]
    w_head_eff = (s_prev.reshape(-1, 1) * params["w_head"]) / float(n_tokens)
    b_head_eff = t_prev @ params["w_head"] + params["b_head"]

    c_in = params["w_emb"].shape[0]
    return dict(
        w_emb=pad2(params["w_emb"], c_in, hp).astype(jnp.bfloat16),
        b_emb=pad2(params["b_emb"], 1, hp),
        w_mix=jnp.stack([pad2(w, hp, hp) for w in w_mix_eff]).astype(jnp.bfloat16),
        b_mix=jnp.stack([pad2(b, 1, hp) for b in b_mix_eff]),
        w_head=pad2(w_head_eff, hp, kp),        # f32: head runs once per image
        b_head=pad2(b_head_eff, 1, kp),
    )


def channel_mixer_forward(x_nchw, params, *, patch_size, depth, gelu_bf16=None):
    assert depth >= 1
    if gelu_bf16 is None:
        gelu_bf16 = _use_bf16_gelu()

    N, C, H, W = x_nchw.shape
    h = params["w_emb"].shape[1]
    K = params["w_head"].shape[1]
    HP = _round_up(h, 128)                                     # lane-dense hidden dim
    KP = _round_up(K, 128)                                     # lane-dense head output

    vmem_cap = _vmem_capacity_bytes()

    tok, L = _pool_tokens(x_nchw, patch_size)                  # (N, L, C)
    # Token-tile size: generation dependent (128 MiB chips amortize grid-step overhead with a
    # bigger tile; 64 MiB v7x stays at 512).  bf16 sublane packing -> multiples of 16.
    tm_cap = 1024 if vmem_cap >= (96 << 20) else 512
    TM = min(tm_cap, _round_up(L, 16))
    L_pad = _round_up(L, TM)
    n_tiles = L_pad // TM
    needs_mask = L_pad != L
    tok = jnp.pad(tok, ((0, 0), (0, L_pad - L), (0, 0))).astype(jnp.bfloat16)

    prep = _fold_and_pad(params, depth, L, HP, KP)
    kernel = functools.partial(_channel_mixer_kernel, depth, L, TM, needs_mask, gelu_bf16)

    resident = sum(int(a.size) * a.dtype.itemsize for a in prep.values())

    def build(single_buffer):
        wmode = dict(pipeline_mode=pl.Buffered(1)) if single_buffer else {}
        weight_bufs = 1 if single_buffer else 2
        # VMEM budget: resident weights + double-buffered (lane-padded) bf16 token tile +
        # unrolled-layer activation ping-pong + output block + (8,HP) accumulator + headroom;
        # capped at ~3/4 of the chip's physical per-core VMEM (v7x = 64 MiB).
        need = (weight_bufs * resident
                + 2 * TM * max(C, 128) * 2          # tok block (bf16, lane padded, x2 buffers)
                + 3 * TM * HP * 4                   # live f32/bf16 layer intermediates
                + 2 * KP * 4 + 8 * HP * 4
                + (4 << 20))
        vmem_limit = int(min(max(need, 16 << 20), vmem_cap * 3 // 4, 100 << 20))
        return pl.pallas_call(
            kernel,
            out_shape=jax.ShapeDtypeStruct((N, 1, KP), jnp.float32),
            grid=(N, n_tiles),
            in_specs=[
                pl.BlockSpec((None, TM, C), lambda n, t: (n, t, 0)),       # streamed token tiles
                pl.BlockSpec((C, HP), lambda n, t: (0, 0), **wmode),       # resident weights ...
                pl.BlockSpec((1, HP), lambda n, t: (0, 0), **wmode),
                pl.BlockSpec((depth, HP, HP), lambda n, t: (0, 0, 0), **wmode),
                pl.BlockSpec((depth, 1, HP), lambda n, t: (0, 0, 0), **wmode),
                pl.BlockSpec((HP, KP), lambda n, t: (0, 0), **wmode),
                pl.BlockSpec((1, KP), lambda n, t: (0, 0), **wmode),
            ],
            out_specs=pl.BlockSpec((None, 1, KP), lambda n, t: (n, 0, 0)),
            scratch_shapes=[pltpu.VMEM((8, HP), jnp.float32)],
            compiler_params=pltpu.CompilerParams(
                dimension_semantics=("parallel", "arbitrary"),
                vmem_limit_bytes=vmem_limit),
        )

    args = (tok, prep["w_emb"], prep["b_emb"], prep["w_mix"], prep["b_mix"],
            prep["w_head"], prep["b_head"])
    try:
        out = build(True)(*args)      # single-buffered resident weights (constant index_map)
    except Exception:
        out = build(False)(*args)     # fallback if this jax/Mosaic rejects Buffered(1) here

    return out[:, 0, :K]


def channel_mixer_reference(x_nchw, params, *, patch_size, depth):
    """Pure-JAX f32 reference mirroring the PyTorch forward (unfolded BN, no padding)."""
    N, C, H, W = x_nchw.shape
    Ho, Wo = H // patch_size, W // patch_size
    xc = x_nchw[:, :, :Ho * patch_size, :Wo * patch_size].astype(jnp.float32)
    pooled = xc.reshape(N, C, Ho, patch_size, Wo, patch_size).max(axis=(3, 5))
    tok = pooled.transpose(0, 2, 3, 1).reshape(N * Ho * Wo, C)
    z = tok @ params["w_emb"] + params["b_emb"]
    z = jax.nn.gelu(z, approximate=True)
    z = z * params["s_emb"] + params["t_emb"]
    for d in range(depth):
        z = z @ params["w_mix"][d] + params["b_mix"][d]
        z = jax.nn.gelu(z, approximate=True)
        z = z * params["s_mix"][d] + params["t_mix"][d]
    feat = z.reshape(N, Ho * Wo, -1).mean(axis=1)
    return feat @ params["w_head"] + params["b_head"]


def channel_mixer_matched_reference(x_nchw, params, *, patch_size, depth, gelu_bf16=None):
    """Replays the kernel's exact math (folded BN, bf16 matmuls, bf16-or-f32 GELU, padded
    channels) in pure JAX -- tight check of the kernel mechanics (tiling, masking, accumulation)."""
    if gelu_bf16 is None:
        gelu_bf16 = _use_bf16_gelu()
    act = jnp.bfloat16 if gelu_bf16 else jnp.float32
    N, C, H, W = x_nchw.shape
    h = params["w_emb"].shape[1]
    K = params["w_head"].shape[1]
    HP, KP = _round_up(h, 128), _round_up(K, 128)
    tok, L = _pool_tokens(x_nchw, patch_size)
    prep = _fold_and_pad(params, depth, L, HP, KP)
    z = jnp.dot(tok.reshape(N * L, C).astype(jnp.bfloat16), prep["w_emb"],
                preferred_element_type=jnp.float32) + prep["b_emb"]
    z = jax.nn.gelu(z.astype(act), approximate=True)
    for d in range(depth):
        z = jnp.dot(z.astype(jnp.bfloat16), prep["w_mix"][d],
                    preferred_element_type=jnp.float32) + prep["b_mix"][d]
        z = jax.nn.gelu(z.astype(act), approximate=True)
    pooled = z.astype(jnp.float32).reshape(N, L, HP).sum(axis=1)    # 1/L folded into w_head
    return (pooled @ prep["w_head"] + prep["b_head"])[:, :K]


def init_params(key, input_dim, h, depth, n_classes, eps=1e-5):
    keys = jax.random.split(key, depth + 2)

    def conv_init(k, cin, cout):
        bound = 1.0 / float(cin) ** 0.5
        kw, kb = jax.random.split(k)
        w = jax.random.uniform(kw, (cin, cout), jnp.float32, -bound, bound)
        b = jax.random.uniform(kb, (1, cout), jnp.float32, -bound, bound)
        return w, b

    def bn_fold(cout):
        # PyTorch BatchNorm2d defaults (eval mode): gamma=1, beta=0, mean=0, var=1.
        gamma = jnp.ones((1, cout), jnp.float32)
        beta = jnp.zeros((1, cout), jnp.float32)
        mean = jnp.zeros((1, cout), jnp.float32)
        var = jnp.ones((1, cout), jnp.float32)
        scale = gamma / jnp.sqrt(var + eps)
        shift = beta - mean * scale
        return scale, shift

    w_emb, b_emb = conv_init(keys[0], input_dim, h)
    s_emb, t_emb = bn_fold(h)

    w_mix, b_mix, s_mix, t_mix = [], [], [], []
    for d in range(depth):
        w, b = conv_init(keys[1 + d], h, h)
        s, t = bn_fold(h)
        w_mix.append(w)
        b_mix.append(b)
        s_mix.append(s)
        t_mix.append(t)

    bound = 1.0 / float(h) ** 0.5
    kw, kb = jax.random.split(keys[-1])
    w_head = jax.random.uniform(kw, (h, n_classes), jnp.float32, -bound, bound)
    b_head = jax.random.uniform(kb, (1, n_classes), jnp.float32, -bound, bound)

    return {
        "w_emb": w_emb, "b_emb": b_emb, "s_emb": s_emb, "t_emb": t_emb,
        "w_mix": jnp.stack(w_mix), "b_mix": jnp.stack(b_mix),
        "s_mix": jnp.stack(s_mix), "t_mix": jnp.stack(t_mix),
        "w_head": w_head, "b_head": b_head,
    }


if __name__ == "__main__":
    key = jax.random.PRNGKey(0)
    kx, kp = jax.random.split(key)

    # Small shapes consistent with the module: NCHW input, patch_size=7, n_classes=19.
    N, C, H, W = 2, 4, 16, 16
    patch_size, h, depth, n_classes = 7, 32, 2, 19

    x = jax.random.normal(kx, (N, C, H, W), jnp.float32)
    params = init_params(kp, C, h, depth, n_classes)

    gelu_bf16 = _use_bf16_gelu()
    out = channel_mixer_forward(x, params, patch_size=patch_size, depth=depth,
                                gelu_bf16=gelu_bf16)
    jax.block_until_ready(out)
    assert out.shape == (N, n_classes), out.shape

    # Tight check: kernel vs a pure-JAX replay of the same (folded, bf16) math.
    ref_match = channel_mixer_matched_reference(x, params, patch_size=patch_size, depth=depth,
                                                gelu_bf16=gelu_bf16)
    assert jnp.allclose(out, ref_match, rtol=2e-3, atol=2e-3), (out, ref_match)

    # Semantic check: kernel vs the f32 PyTorch-mirroring reference (bf16 matmuls/GELU -> loose tol).
    ref_f32 = channel_mixer_reference(x, params, patch_size=patch_size, depth=depth)
    assert jnp.allclose(out, ref_f32, rtol=5e-2, atol=8e-2), (out, ref_f32)

    print("KERNEL_OK")
</pallas_src>

<mosaic_0001>
module attributes {stable_mosaic.version = 11 : i64} {
  func.func @_channel_mixer_kernel(%arg0: i32, %arg1: i32, %arg2: memref<1x16x4xbf16, #tpu.memory_space<vmem>>, %arg3: memref<4x128xbf16, #tpu.memory_space<vmem>>, %arg4: memref<1x128xf32, #tpu.memory_space<vmem>>, %arg5: memref<2x128x128xbf16, #tpu.memory_space<vmem>>, %arg6: memref<2x1x128xf32, #tpu.memory_space<vmem>>, %arg7: memref<128x128xf32, #tpu.memory_space<vmem>>, %arg8: memref<1x128xf32, #tpu.memory_space<vmem>>, %arg9: memref<1x1x128xf32, #tpu.memory_space<vmem>>, %arg10: memref<8x128xf32, #tpu.memory_space<vmem>>) attributes {dimension_semantics = [#tpu.dimension_semantics<parallel>, #tpu.dimension_semantics<arbitrary>], iteration_bounds = array<i64: 2, 1>, scalar_prefetch = 0 : i64, scratch_operands = 1 : i64, tpu.core_type = #tpu.core_type<tc>, window_params = [{transform_indices = @transform_0, window_bounds = array<i64: 1, 16, 4>}, {pipeline_mode = #tpu.pipeline_mode<synchronous>, transform_indices = @transform_1, window_bounds = array<i64: 4, 128>}, {pipeline_mode = #tpu.pipeline_mode<synchronous>, transform_indices = @transform_2, window_bounds = array<i64: 1, 128>}, {pipeline_mode = #tpu.pipeline_mode<synchronous>, transform_indices = @transform_3, window_bounds = array<i64: 2, 128, 128>}, {pipeline_mode = #tpu.pipeline_mode<synchronous>, transform_indices = @transform_4, window_bounds = array<i64: 2, 1, 128>}, {pipeline_mode = #tpu.pipeline_mode<synchronous>, transform_indices = @transform_5, window_bounds = array<i64: 128, 128>}, {pipeline_mode = #tpu.pipeline_mode<synchronous>, transform_indices = @transform_6, window_bounds = array<i64: 1, 128>}, {transform_indices = @transform_7, window_bounds = array<i64: 1, 1, 128>}]} {
    %c0_i32 = arith.constant 0 : i32
    %0 = arith.cmpi eq, %arg1, %c0_i32 : i32
    %1 = arith.extui %0 : i1 to i32
    %c0_i32_0 = arith.constant 0 : i32
    %2 = arith.cmpi ne, %1, %c0_i32_0 : i32
    scf.if %2 {
      %cst_38 = arith.constant 0.000000e+00 : f32
      %74 = vector.broadcast %cst_38 : f32 to vector<8x128xf32>
      %c0_39 = arith.constant 0 : index
      %c0_40 = arith.constant 0 : index
      %75 = vector.load %arg10[%c0_39, %c0_40] : memref<8x128xf32, #tpu.memory_space<vmem>>, vector<8x128xf32>
      tpu.vector_store %arg10[%c0_39, %c0_40], %74 {strides = array<i32>} : memref<8x128xf32, #tpu.memory_space<vmem>>, vector<8x128xf32>,
    } else {
    }
    %c0 = arith.constant 0 : index
    %c0_1 = arith.constant 0 : index
    %c0_2 = arith.constant 0 : index
    %3 = vector.load %arg2[%c0, %c0_1, %c0_2] : memref<1x16x4xbf16, #tpu.memory_space<vmem>>, vector<1x16x4xbf16>
    %4 = vector.shape_cast %3 : vector<1x16x4xbf16> to vector<16x4xbf16>
    %c0_3 = arith.constant 0 : index
    %c0_4 = arith.constant 0 : index
    %5 = vector.load %arg3[%c0_3, %c0_4] : memref<4x128xbf16, #tpu.memory_space<vmem>>, vector<4x128xbf16>
    %cst = arith.constant dense<0.000000e+00> : vector<16x128xf32>
    %6 = tpu.matmul %4, %5, %cst {dimension_numbers = #tpu.dot_dimension_numbers<[1], [0], [0], [1], [0, 0, 1, 1], [], []>} : vector<16x4xbf16>, vector<4x128xbf16>, vector<16x128xf32> -> vector<16x128xf32>
    %c0_5 = arith.constant 0 : index
    %c0_6 = arith.constant 0 : index
    %7 = vector.load %arg4[%c0_5, %c0_6] : memref<1x128xf32, #tpu.memory_space<vmem>>, vector<1x128xf32>
    %8 = vector.broadcast %7 : vector<1x128xf32> to vector<16x128xf32>
    %9 = arith.addf %6, %8 : vector<16x128xf32>
    %10 = arith.mulf %9, %9 : vector<16x128xf32>
    %11 = arith.mulf %9, %10 : vector<16x128xf32>
    %cst_7 = arith.constant 4.471500e-02 : f32
    %12 = vector.broadcast %cst_7 : f32 to vector<16x128xf32>
    %13 = arith.mulf %12, %11 : vector<16x128xf32>
    %14 = arith.addf %9, %13 : vector<16x128xf32>
    %cst_8 = arith.constant 0.797884583 : f32
    %15 = vector.broadcast %cst_8 : f32 to vector<16x128xf32>
    %16 = arith.mulf %15, %14 : vector<16x128xf32>
    %17 = math.tanh %16 : vector<16x128xf32>
    %cst_9 = arith.constant 1.000000e+00 : f32
    %18 = vector.broadcast %cst_9 : f32 to vector<16x128xf32>
    %19 = arith.addf %18, %17 : vector<16x128xf32>
    %cst_10 = arith.constant 5.000000e-01 : f32
    %20 = vector.broadcast %cst_10 : f32 to vector<16x128xf32>
    %21 = arith.mulf %20, %19 : vector<16x128xf32>
    %22 = arith.mulf %9, %21 : vector<16x128xf32>
    %23 = arith.truncf %22 : vector<16x128xf32> to vector<16x128xbf16>
    %c0_11 = arith.constant 0 : index
    %c0_12 = arith.constant 0 : index
    %c0_13 = arith.constant 0 : index
    %24 = vector.load %arg5[%c0_11, %c0_12, %c0_13] : memref<2x128x128xbf16, #tpu.memory_space<vmem>>, vector<1x128x128xbf16>
    %25 = vector.shape_cast %24 : vector<1x128x128xbf16> to vector<128x128xbf16>
    %cst_14 = arith.constant dense<0.000000e+00> : vector<16x128xf32>
    %26 = tpu.matmul %23, %25, %cst_14 {dimension_numbers = #tpu.dot_dimension_numbers<[1], [0], [0], [1], [0, 0, 1, 1], [], []>} : vector<16x128xbf16>, vector<128x128xbf16>, vector<16x128xf32> -> vector<16x128xf32>
    %c0_15 = arith.constant 0 : index
    %c0_16 = arith.constant 0 : index
    %c0_17 = arith.constant 0 : index
    %27 = vector.load %arg6[%c0_15, %c0_16, %c0_17] : memref<2x1x128xf32, #tpu.memory_space<vmem>>, vector<1x1x128xf32>
    %28 = vector.shape_cast %27 : vector<1x1x128xf32> to vector<1x128xf32>
    %29 = vector.broadcast %28 : vector<1x128xf32> to vector<16x128xf32>
    %30 = arith.addf %26, %29 : vector<16x128xf32>
    %31 = arith.mulf %30, %30 : vector<16x128xf32>
    %32 = arith.mulf %30, %31 : vector<16x128xf32>
    %cst_18 = arith.constant 4.471500e-02 : f32
    %33 = vector.broadcast %cst_18 : f32 to vector<16x128xf32>
    %34 = arith.mulf %33, %32 : vector<16x128xf32>
    %35 = arith.addf %30, %34 : vector<16x128xf32>
    %cst_19 = arith.constant 0.797884583 : f32
    %36 = vector.broadcast %cst_19 : f32 to vector<16x128xf32>
    %37 = arith.mulf %36, %35 : vector<16x128xf32>
    %38 = math.tanh %37 : vector<16x128xf32>
    %cst_20 = arith.constant 1.000000e+00 : f32
    %39 = vector.broadcast %cst_20 : f32 to vector<16x128xf32>
    %40 = arith.addf %39, %38 : vector<16x128xf32>
    %cst_21 = arith.constant 5.000000e-01 : f32
    %41 = vector.broadcast %cst_21 : f32 to vector<16x128xf32>
    %42 = arith.mulf %41, %40 : vector<16x128xf32>
    %43 = arith.mulf %30, %42 : vector<16x128xf32>
    %44 = arith.truncf %43 : vector<16x128xf32> to vector<16x128xbf16>
    %c1 = arith.constant 1 : index
    %c0_22 = arith.constant 0 : index
    %c0_23 = arith.constant 0 : index
    %45 = vector.load %arg5[%c1, %c0_22, %c0_23] : memref<2x128x128xbf16, #tpu.memory_space<vmem>>, vector<1x128x128xbf16>
    %46 = vector.shape_cast %45 : vector<1x128x128xbf16> to vector<128x128xbf16>
    %cst_24 = arith.constant dense<0.000000e+00> : vector<16x128xf32>
    %47 = tpu.matmul %44, %46, %cst_24 {dimension_numbers = #tpu.dot_dimension_numbers<[1], [0], [0], [1], [0, 0, 1, 1], [], []>} : vector<16x128xbf16>, vector<128x128xbf16>, vector<16x128xf32> -> vector<16x128xf32>
    %c1_25 = arith.constant 1 : index
    %c0_26 = arith.constant 0 : index
    %c0_27 = arith.constant 0 : index
    %48 = vector.load %arg6[%c1_25, %c0_26, %c0_27] : memref<2x1x128xf32, #tpu.memory_space<vmem>>, vector<1x1x128xf32>
    %49 = vector.shape_cast %48 : vector<1x1x128xf32> to vector<1x128xf32>
    %50 = vector.broadcast %49 : vector<1x128xf32> to vector<16x128xf32>
    %51 = arith.addf %47, %50 : vector<16x128xf32>
    %52 = arith.mulf %51, %51 : vector<16x128xf32>
    %53 = arith.mulf %51, %52 : vector<16x128xf32>
    %cst_28 = arith.constant 4.471500e-02 : f32
    %54 = vector.broadcast %cst_28 : f32 to vector<16x128xf32>
    %55 = arith.mulf %54, %53 : vector<16x128xf32>
    %56 = arith.addf %51, %55 : vector<16x128xf32>
    %cst_29 = arith.constant 0.797884583 : f32
    %57 = vector.broadcast %cst_29 : f32 to vector<16x128xf32>
    %58 = arith.mulf %57, %56 : vector<16x128xf32>
    %59 = math.tanh %58 : vector<16x128xf32>
    %cst_30 = arith.constant 1.000000e+00 : f32
    %60 = vector.broadcast %cst_30 : f32 to vector<16x128xf32>
    %61 = arith.addf %60, %59 : vector<16x128xf32>
    %cst_31 = arith.constant 5.000000e-01 : f32
    %62 = vector.broadcast %cst_31 : f32 to vector<16x128xf32>
    %63 = arith.mulf %62, %61 : vector<16x128xf32>
    %64 = arith.mulf %51, %63 : vector<16x128xf32>
    %c0_i32_32 = arith.constant 0 : i32
    %65 = arith.cmpi eq, %arg1, %c0_i32_32 : i32
    %66 = arith.extui %65 : i1 to i32
    %c0_i32_33 = arith.constant 0 : i32
    %67 = arith.cmpi ne, %66, %c0_i32_33 : i32
    scf.if %67 {
      %c16_i32 = arith.constant 16 : i32
      %74 = arith.muli %arg1, %c16_i32 : i32
      %75 = tpu.iota {dimensions = array<i32: 0>} : vector<16x1xi32>
      %76 = vector.broadcast %74 : i32 to vector<16x1xi32>
      %77 = arith.addi %76, %75 : vector<16x1xi32>
      %c4_i32 = arith.constant 4 : i32
      %78 = vector.broadcast %c4_i32 : i32 to vector<16x1xi32>
      %79 = arith.cmpi slt, %77, %78 : vector<16x1xi32>
      %cst_38 = arith.constant 0.000000e+00 : f32
      %80 = vector.broadcast %cst_38 : f32 to vector<16x128xf32>
      %81 = vector.shape_cast %79 : vector<16x1xi1> to vector<16x1xi1>
      %82 = vector.broadcast %81 : vector<16x1xi1> to vector<16x128xi1>
      %83 = arith.select %82, %64, %80 : vector<16x128xi1>, vector<16x128xf32>
      %c0_39 = arith.constant 0 : index
      %c0_40 = arith.constant 0 : index
      %84 = vector.load %arg10[%c0_39, %c0_40] : memref<8x128xf32, #tpu.memory_space<vmem>>, vector<8x128xf32>
      %85 = vector.shape_cast %83 : vector<16x128xf32> to vector<2x8x128xf32>
      %cst_41 = arith.constant dense<0.000000e+00> : vector<8x128xf32>
      %86 = vector.multi_reduction <add>, %85, %cst_41 [0] : vector<2x8x128xf32> to vector<8x128xf32>
      %87 = arith.addf %84, %86 : vector<8x128xf32>
      %c0_42 = arith.constant 0 : index
      %c0_43 = arith.constant 0 : index
      %88 = vector.load %arg10[%c0_42, %c0_43] : memref<8x128xf32, #tpu.memory_space<vmem>>, vector<8x128xf32>
      tpu.vector_store %arg10[%c0_42, %c0_43], %87 {strides = array<i32>} : memref<8x128xf32, #tpu.memory_space<vmem>>, vector<8x128xf32>,
    } else {
    }
    %c0_i32_34 = arith.constant 0 : i32
    %68 = arith.cmpi ne, %arg1, %c0_i32_34 : i32
    %69 = arith.extui %68 : i1 to i32
    %c0_i32_35 = arith.constant 0 : i32
    %70 = arith.cmpi ne, %69, %c0_i32_35 : i32
    scf.if %70 {
      %c0_38 = arith.constant 0 : index
      %c0_39 = arith.constant 0 : index
      %74 = vector.load %arg10[%c0_38, %c0_39] : memref<8x128xf32, #tpu.memory_space<vmem>>, vector<8x128xf32>
      %75 = vector.shape_cast %64 : vector<16x128xf32> to vector<2x8x128xf32>
      %cst_40 = arith.constant dense<0.000000e+00> : vector<8x128xf32>
      %76 = vector.multi_reduction <add>, %75, %cst_40 [0] : vector<2x8x128xf32> to vector<8x128xf32>
      %77 = arith.addf %74, %76 : vector<8x128xf32>
      %c0_41 = arith.constant 0 : index
      %c0_42 = arith.constant 0 : index
      %78 = vector.load %arg10[%c0_41, %c0_42] : memref<8x128xf32, #tpu.memory_space<vmem>>, vector<8x128xf32>
      tpu.vector_store %arg10[%c0_41, %c0_42], %77 {strides = array<i32>} : memref<8x128xf32, #tpu.memory_space<vmem>>, vector<8x128xf32>,
    } else {
    }
    %c0_i32_36 = arith.constant 0 : i32
    %71 = arith.cmpi eq, %arg1, %c0_i32_36 : i32
    %72 = arith.extui %71 : i1 to i32
    %c0_i32_37 = arith.constant 0 : i32
    %73 = arith.cmpi ne, %72, %c0_i32_37 : i32
    scf.if %73 {
      %c0_38 = arith.constant 0 : index
      %c0_39 = arith.constant 0 : index
      %74 = vector.load %arg10[%c0_38, %c0_39] : memref<8x128xf32, #tpu.memory_space<vmem>>, vector<8x128xf32>
      %cst_40 = arith.constant dense<0.000000e+00> : vector<128xf32>
      %75 = vector.multi_reduction <add>, %74, %cst_40 [0] : vector<8x128xf32> to vector<128xf32>
      %76 = vector.shape_cast %75 : vector<128xf32> to vector<1x128xf32>
      %c0_41 = arith.constant 0 : index
      %c0_42 = arith.constant 0 : index
      %77 = vector.load %arg7[%c0_41, %c0_42] : memref<128x128xf32, #tpu.memory_space<vmem>>, vector<128x128xf32>
      %cst_43 = arith.constant dense<0.000000e+00> : vector<1x128xf32>
      %78 = tpu.matmul %76, %77, %cst_43 {dimension_numbers = #tpu.dot_dimension_numbers<[1], [0], [0], [1], [0, 0, 1, 1], [], []>} : vector<1x128xf32>, vector<128x128xf32>, vector<1x128xf32> -> vector<1x128xf32>
      %c0_44 = arith.constant 0 : index
      %c0_45 = arith.constant 0 : index
      %79 = vector.load %arg8[%c0_44, %c0_45] : memref<1x128xf32, #tpu.memory_space<vmem>>, vector<1x128xf32>
      %80 = arith.addf %78, %79 : vector<1x128xf32>
      %c0_46 = arith.constant 0 : index
      %c0_47 = arith.constant 0 : index
      %c0_48 = arith.constant 0 : index
      %81 = vector.load %arg9[%c0_46, %c0_47, %c0_48] : memref<1x1x128xf32, #tpu.memory_space<vmem>>, vector<1x1x128xf32>
      %82 = vector.shape_cast %81 : vector<1x1x128xf32> to vector<1x128xf32>
      %83 = vector.shape_cast %80 : vector<1x128xf32> to vector<1x1x128xf32>
      tpu.vector_store %arg9[%c0_46, %c0_47, %c0_48], %83 {strides = array<i32>} : memref<1x1x128xf32, #tpu.memory_space<vmem>>, vector<1x1x128xf32>,
    } else {
    }
    return
  }
  func.func @transform_0(%arg0: i32, %arg1: i32) -> (i32, i32, i32) {
    %c0_i32 = arith.constant 0 : i32
    %c0_i32_0 = arith.constant 0 : i32
    return %arg0, %arg1, %c0_i32 : i32, i32, i32
  }
  func.func @transform_1(%arg0: i32, %arg1: i32) -> (i32, i32) {
    %c0_i32 = arith.constant 0 : i32
    %c0_i32_0 = arith.constant 0 : i32
    %c0_i32_1 = arith.constant 0 : i32
    return %c0_i32, %c0_i32_0 : i32, i32
  }
  func.func @transform_2(%arg0: i32, %arg1: i32) -> (i32, i32) {
    %c0_i32 = arith.constant 0 : i32
    %c0_i32_0 = arith.constant 0 : i32
    %c0_i32_1 = arith.constant 0 : i32
    return %c0_i32, %c0_i32_0 : i32, i32
  }
  func.func @transform_3(%arg0: i32, %arg1: i32) -> (i32, i32, i32) {
    %c0_i32 = arith.constant 0 : i32
    %c0_i32_0 = arith.constant 0 : i32
    %c0_i32_1 = arith.constant 0 : i32
    %c0_i32_2 = arith.constant 0 : i32
    return %c0_i32, %c0_i32_0, %c0_i32_1 : i32, i32, i32
  }
  func.func @transform_4(%arg0: i32, %arg1: i32) -> (i32, i32, i32) {
    %c0_i32 = arith.constant 0 : i32
    %c0_i32_0 = arith.constant 0 : i32
    %c0_i32_1 = arith.constant 0 : i32
    %c0_i32_2 = arith.constant 0 : i32
    return %c0_i32, %c0_i32_0, %c0_i32_1 : i32, i32, i32
  }
  func.func @transform_5(%arg0: i32, %arg1: i32) -> (i32, i32) {
    %c0_i32 = arith.constant 0 : i32
    %c0_i32_0 = arith.constant 0 : i32
    %c0_i32_1 = arith.constant 0 : i32
    return %c0_i32, %c0_i32_0 : i32, i32
  }
  func.func @transform_6(%arg0: i32, %arg1: i32) -> (i32, i32) {
    %c0_i32 = arith.constant 0 : i32
    %c0_i32_0 = arith.constant 0 : i32
    %c0_i32_1 = arith.constant 0 : i32
    return %c0_i32, %c0_i32_0 : i32, i32
  }
  func.func @transform_7(%arg0: i32, %arg1: i32) -> (i32, i32, i32) {
    %c0_i32 = arith.constant 0 : i32
    %c0_i32_0 = arith.constant 0 : i32
    %c0_i32_1 = arith.constant 0 : i32
    return %arg0, %c0_i32, %c0_i32_0 : i32, i32, i32
  }
}

module attributes {stable_mosaic.version = 11 : i64} {
  func.func @_channel_mixer_kernel(%arg0: i32, %arg1: i32, %arg2: memref<1x16x4xbf16, #tpu.memory_space<vmem>>, %arg3: memref<4x128xbf16, #tpu.memory_space<vmem>>, %arg4: memref<1x128xf32, #tpu.memory_space<vmem>>, %arg5: memref<2x128x128xbf16, #tpu.memory_space<vmem>>, %arg6: memref<2x1x128xf32, #tpu.memory_space<vmem>>, %arg7: memref<128x128xf32, #tpu.memory_space<vmem>>, %arg8: memref<1x128xf32, #tpu.memory_space<vmem>>, %arg9: memref<1x1x128xf32, #tpu.memory_space<vmem>>, %arg10: memref<8x128xf32, #tpu.memory_space<vmem>>) attributes {dimension_semantics = [#tpu.dimension_semantics<parallel>, #tpu.dimension_semantics<arbitrary>], iteration_bounds = array<i64: 2, 1>, scalar_prefetch = 0 : i64, scratch_operands = 1 : i64, tpu.core_type = #tpu.core_type<tc>, window_params = [{transform_indices = @transform_0, window_bounds = array<i64: 1, 16, 4>}, {pipeline_mode = #tpu.pipeline_mode<synchronous>, transform_indices = @transform_1, window_bounds = array<i64: 4, 128>}, {pipeline_mode = #tpu.pipeline_mode<synchronous>, transform_indices = @transform_2, window_bounds = array<i64: 1, 128>}, {pipeline_mode = #tpu.pipeline_mode<synchronous>, transform_indices = @transform_3, window_bounds = array<i64: 2, 128, 128>}, {pipeline_mode = #tpu.pipeline_mode<synchronous>, transform_indices = @transform_4, window_bounds = array<i64: 2, 1, 128>}, {pipeline_mode = #tpu.pipeline_mode<synchronous>, transform_indices = @transform_5, window_bounds = array<i64: 128, 128>}, {pipeline_mode = #tpu.pipeline_mode<synchronous>, transform_indices = @transform_6, window_bounds = array<i64: 1, 128>}, {transform_indices = @transform_7, window_bounds = array<i64: 1, 1, 128>}]} {
    %c0_i32 = arith.constant 0 : i32
    %0 = arith.cmpi eq, %arg1, %c0_i32 : i32
    %1 = arith.extui %0 : i1 to i32
    %c0_i32_0 = arith.constant 0 : i32
    %2 = arith.cmpi ne, %1, %c0_i32_0 : i32
    scf.if %2 {
      %cst_38 = arith.constant 0.000000e+00 : f32
      %74 = vector.broadcast %cst_38 : f32 to vector<8x128xf32>
      %c0_39 = arith.constant 0 : index
      %c0_40 = arith.constant 0 : index
      %75 = vector.load %arg10[%c0_39, %c0_40] : memref<8x128xf32, #tpu.memory_space<vmem>>, vector<8x128xf32>
      tpu.vector_store %arg10[%c0_39, %c0_40], %74 {strides = array<i32>} : memref<8x128xf32, #tpu.memory_space<vmem>>, vector<8x128xf32>,
    } else {
    }
    %c0 = arith.constant 0 : index
    %c0_1 = arith.constant 0 : index
    %c0_2 = arith.constant 0 : index
    %3 = vector.load %arg2[%c0, %c0_1, %c0_2] : memref<1x16x4xbf16, #tpu.memory_space<vmem>>, vector<1x16x4xbf16>
    %4 = vector.shape_cast %3 : vector<1x16x4xbf16> to vector<16x4xbf16>
    %c0_3 = arith.constant 0 : index
    %c0_4 = arith.constant 0 : index
    %5 = vector.load %arg3[%c0_3, %c0_4] : memref<4x128xbf16, #tpu.memory_space<vmem>>, vector<4x128xbf16>
    %cst = arith.constant dense<0.000000e+00> : vector<16x128xf32>
    %6 = tpu.matmul %4, %5, %cst {dimension_numbers = #tpu.dot_dimension_numbers<[1], [0], [0], [1], [0, 0, 1, 1], [], []>} : vector<16x4xbf16>, vector<4x128xbf16>, vector<16x128xf32> -> vector<16x128xf32>
    %c0_5 = arith.constant 0 : index
    %c0_6 = arith.constant 0 : index
    %7 = vector.load %arg4[%c0_5, %c0_6] : memref<1x128xf32, #tpu.memory_space<vmem>>, vector<1x128xf32>
    %8 = vector.broadcast %7 : vector<1x128xf32> to vector<16x128xf32>
    %9 = arith.addf %6, %8 : vector<16x128xf32>
    %10 = arith.mulf %9, %9 : vector<16x128xf32>
    %11 = arith.mulf %9, %10 : vector<16x128xf32>
    %cst_7 = arith.constant 4.471500e-02 : f32
    %12 = vector.broadcast %cst_7 : f32 to vector<16x128xf32>
    %13 = arith.mulf %12, %11 : vector<16x128xf32>
    %14 = arith.addf %9, %13 : vector<16x128xf32>
    %cst_8 = arith.constant 0.797884583 : f32
    %15 = vector.broadcast %cst_8 : f32 to vector<16x128xf32>
    %16 = arith.mulf %15, %14 : vector<16x128xf32>
    %17 = math.tanh %16 : vector<16x128xf32>
    %cst_9 = arith.constant 1.000000e+00 : f32
    %18 = vector.broadcast %cst_9 : f32 to vector<16x128xf32>
    %19 = arith.addf %18, %17 : vector<16x128xf32>
    %cst_10 = arith.constant 5.000000e-01 : f32
    %20 = vector.broadcast %cst_10 : f32 to vector<16x128xf32>
    %21 = arith.mulf %20, %19 : vector<16x128xf32>
    %22 = arith.mulf %9, %21 : vector<16x128xf32>
    %23 = arith.truncf %22 : vector<16x128xf32> to vector<16x128xbf16>
    %c0_11 = arith.constant 0 : index
    %c0_12 = arith.constant 0 : index
    %c0_13 = arith.constant 0 : index
    %24 = vector.load %arg5[%c0_11, %c0_12, %c0_13] : memref<2x128x128xbf16, #tpu.memory_space<vmem>>, vector<1x128x128xbf16>
    %25 = vector.shape_cast %24 : vector<1x128x128xbf16> to vector<128x128xbf16>
    %cst_14 = arith.constant dense<0.000000e+00> : vector<16x128xf32>
    %26 = tpu.matmul %23, %25, %cst_14 {dimension_numbers = #tpu.dot_dimension_numbers<[1], [0], [0], [1], [0, 0, 1, 1], [], []>} : vector<16x128xbf16>, vector<128x128xbf16>, vector<16x128xf32> -> vector<16x128xf32>
    %c0_15 = arith.constant 0 : index
    %c0_16 = arith.constant 0 : index
    %c0_17 = arith.constant 0 : index
    %27 = vector.load %arg6[%c0_15, %c0_16, %c0_17] : memref<2x1x128xf32, #tpu.memory_space<vmem>>, vector<1x1x128xf32>
    %28 = vector.shape_cast %27 : vector<1x1x128xf32> to vector<1x128xf32>
    %29 = vector.broadcast %28 : vector<1x128xf32> to vector<16x128xf32>
    %30 = arith.addf %26, %29 : vector<16x128xf32>
    %31 = arith.mulf %30, %30 : vector<16x128xf32>
    %32 = arith.mulf %30, %31 : vector<16x128xf32>
    %cst_18 = arith.constant 4.471500e-02 : f32
    %33 = vector.broadcast %cst_18 : f32 to vector<16x128xf32>
    %34 = arith.mulf %33, %32 : vector<16x128xf32>
    %35 = arith.addf %30, %34 : vector<16x128xf32>
    %cst_19 = arith.constant 0.797884583 : f32
    %36 = vector.broadcast %cst_19 : f32 to vector<16x128xf32>
    %37 = arith.mulf %36, %35 : vector<16x128xf32>
    %38 = math.tanh %37 : vector<16x128xf32>
    %cst_20 = arith.constant 1.000000e+00 : f32
    %39 = vector.broadcast %cst_20 : f32 to vector<16x128xf32>
    %40 = arith.addf %39, %38 : vector<16x128xf32>
    %cst_21 = arith.constant 5.000000e-01 : f32
    %41 = vector.broadcast %cst_21 : f32 to vector<16x128xf32>
    %42 = arith.mulf %41, %40 : vector<16x128xf32>
    %43 = arith.mulf %30, %42 : vector<16x128xf32>
    %44 = arith.truncf %43 : vector<16x128xf32> to vector<16x128xbf16>
    %c1 = arith.constant 1 : index
    %c0_22 = arith.constant 0 : index
    %c0_23 = arith.constant 0 : index
    %45 = vector.load %arg5[%c1, %c0_22, %c0_23] : memref<2x128x128xbf16, #tpu.memory_space<vmem>>, vector<1x128x128xbf16>
    %46 = vector.shape_cast %45 : vector<1x128x128xbf16> to vector<128x128xbf16>
    %cst_24 = arith.constant dense<0.000000e+00> : vector<16x128xf32>
    %47 = tpu.matmul %44, %46, %cst_24 {dimension_numbers = #tpu.dot_dimension_numbers<[1], [0], [0], [1], [0, 0, 1, 1], [], []>} : vector<16x128xbf16>, vector<128x128xbf16>, vector<16x128xf32> -> vector<16x128xf32>
    %c1_25 = arith.constant 1 : index
    %c0_26 = arith.constant 0 : index
    %c0_27 = arith.constant 0 : index
    %48 = vector.load %arg6[%c1_25, %c0_26, %c0_27] : memref<2x1x128xf32, #tpu.memory_space<vmem>>, vector<1x1x128xf32>
    %49 = vector.shape_cast %48 : vector<1x1x128xf32> to vector<1x128xf32>
    %50 = vector.broadcast %49 : vector<1x128xf32> to vector<16x128xf32>
    %51 = arith.addf %47, %50 : vector<16x128xf32>
    %52 = arith.mulf %51, %51 : vector<16x128xf32>
    %53 = arith.mulf %51, %52 : vector<16x128xf32>
    %cst_28 = arith.constant 4.471500e-02 : f32
    %54 = vector.broadcast %cst_28 : f32 to vector<16x128xf32>
    %55 = arith.mulf %54, %53 : vector<16x128xf32>
    %56 = arith.addf %51, %55 : vector<16x128xf32>
    %cst_29 = arith.constant 0.797884583 : f32
    %57 = vector.broadcast %cst_29 : f32 to vector<16x128xf32>
    %58 = arith.mulf %57, %56 : vector<16x128xf32>
    %59 = math.tanh %58 : vector<16x128xf32>
    %cst_30 = arith.constant 1.000000e+00 : f32
    %60 = vector.broadcast %cst_30 : f32 to vector<16x128xf32>
    %61 = arith.addf %60, %59 : vector<16x128xf32>
    %cst_31 = arith.constant 5.000000e-01 : f32
    %62 = vector.broadcast %cst_31 : f32 to vector<16x128xf32>
    %63 = arith.mulf %62, %61 : vector<16x128xf32>
    %64 = arith.mulf %51, %63 : vector<16x128xf32>
    %c0_i32_32 = arith.constant 0 : i32
    %65 = arith.cmpi eq, %arg1, %c0_i32_32 : i32
    %66 = arith.extui %65 : i1 to i32
    %c0_i32_33 = arith.constant 0 : i32
    %67 = arith.cmpi ne, %66, %c0_i32_33 : i32
    scf.if %67 {
      %c16_i32 = arith.constant 16 : i32
      %74 = arith.muli %arg1, %c16_i32 : i32
      %75 = tpu.iota {dimensions = array<i32: 0>} : vector<16x1xi32>
      %76 = vector.broadcast %74 : i32 to vector<16x1xi32>
      %77 = arith.addi %76, %75 : vector<16x1xi32>
      %c4_i32 = arith.constant 4 : i32
      %78 = vector.broadcast %c4_i32 : i32 to vector<16x1xi32>
      %79 = arith.cmpi slt, %77, %78 : vector<16x1xi32>
      %cst_38 = arith.constant 0.000000e+00 : f32
      %80 = vector.broadcast %cst_38 : f32 to vector<16x128xf32>
      %81 = vector.shape_cast %79 : vector<16x1xi1> to vector<16x1xi1>
      %82 = vector.broadcast %81 : vector<16x1xi1> to vector<16x128xi1>
      %83 = arith.select %82, %64, %80 : vector<16x128xi1>, vector<16x128xf32>
      %c0_39 = arith.constant 0 : index
      %c0_40 = arith.constant 0 : index
      %84 = vector.load %arg10[%c0_39, %c0_40] : memref<8x128xf32, #tpu.memory_space<vmem>>, vector<8x128xf32>
      %85 = vector.shape_cast %83 : vector<16x128xf32> to vector<2x8x128xf32>
      %cst_41 = arith.constant dense<0.000000e+00> : vector<8x128xf32>
      %86 = vector.multi_reduction <add>, %85, %cst_41 [0] : vector<2x8x128xf32> to vector<8x128xf32>
      %87 = arith.addf %84, %86 : vector<8x128xf32>
      %c0_42 = arith.constant 0 : index
      %c0_43 = arith.constant 0 : index
      %88 = vector.load %arg10[%c0_42, %c0_43] : memref<8x128xf32, #tpu.memory_space<vmem>>, vector<8x128xf32>
      tpu.vector_store %arg10[%c0_42, %c0_43], %87 {strides = array<i32>} : memref<8x128xf32, #tpu.memory_space<vmem>>, vector<8x128xf32>,
    } else {
    }
    %c0_i32_34 = arith.constant 0 : i32
    %68 = arith.cmpi ne, %arg1, %c0_i32_34 : i32
    %69 = arith.extui %68 : i1 to i32
    %c0_i32_35 = arith.constant 0 : i32
    %70 = arith.cmpi ne, %69, %c0_i32_35 : i32
    scf.if %70 {
      %c0_38 = arith.constant 0 : index
      %c0_39 = arith.constant 0 : index
      %74 = vector.load %arg10[%c0_38, %c0_39] : memref<8x128xf32, #tpu.memory_space<vmem>>, vector<8x128xf32>
      %75 = vector.shape_cast %64 : vector<16x128xf32> to vector<2x8x128xf32>
      %cst_40 = arith.constant dense<0.000000e+00> : vector<8x128xf32>
      %76 = vector.multi_reduction <add>, %75, %cst_40 [0] : vector<2x8x128xf32> to vector<8x128xf32>
      %77 = arith.addf %74, %76 : vector<8x128xf32>
      %c0_41 = arith.constant 0 : index
      %c0_42 = arith.constant 0 : index
      %78 = vector.load %arg10[%c0_41, %c0_42] : memref<8x128xf32, #tpu.memory_space<vmem>>, vector<8x128xf32>
      tpu.vector_store %arg10[%c0_41, %c0_42], %77 {strides = array<i32>} : memref<8x128xf32, #tpu.memory_space<vmem>>, vector<8x128xf32>,
    } else {
    }
    %c0_i32_36 = arith.constant 0 : i32
    %71 = arith.cmpi eq, %arg1, %c0_i32_36 : i32
    %72 = arith.extui %71 : i1 to i32
    %c0_i32_37 = arith.constant 0 : i32
    %73 = arith.cmpi ne, %72, %c0_i32_37 : i32
    scf.if %73 {
      %c0_38 = arith.constant 0 : index
      %c0_39 = arith.constant 0 : index
      %74 = vector.load %arg10[%c0_38, %c0_39] : memref<8x128xf32, #tpu.memory_space<vmem>>, vector<8x128xf32>
      %cst_40 = arith.constant dense<0.000000e+00> : vector<128xf32>
      %75 = vector.multi_reduction <add>, %74, %cst_40 [0] : vector<8x128xf32> to vector<128xf32>
      %76 = vector.shape_cast %75 : vector<128xf32> to vector<1x128xf32>
      %c0_41 = arith.constant 0 : index
      %c0_42 = arith.constant 0 : index
      %77 = vector.load %arg7[%c0_41, %c0_42] : memref<128x128xf32, #tpu.memory_space<vmem>>, vector<128x128xf32>
      %cst_43 = arith.constant dense<0.000000e+00> : vector<1x128xf32>
      %78 = tpu.matmul %76, %77, %cst_43 {dimension_numbers = #tpu.dot_dimension_numbers<[1], [0], [0], [1], [0, 0, 1, 1], [], []>} : vector<1x128xf32>, vector<128x128xf32>, vector<1x128xf32> -> vector<1x128xf32>
      %c0_44 = arith.constant 0 : index
      %c0_45 = arith.constant 0 : index
      %79 = vector.load %arg8[%c0_44, %c0_45] : memref<1x128xf32, #tpu.memory_space<vmem>>, vector<1x128xf32>
      %80 = arith.addf %78, %79 : vector<1x128xf32>
      %c0_46 = arith.constant 0 : index
      %c0_47 = arith.constant 0 : index
      %c0_48 = arith.constant 0 : index
      %81 = vector.load %arg9[%c0_46, %c0_47, %c0_48] : memref<1x1x128xf32, #tpu.memory_space<vmem>>, vector<1x1x128xf32>
      %82 = vector.shape_cast %81 : vector<1x1x128xf32> to vector<1x128xf32>
      %83 = vector.shape_cast %80 : vector<1x128xf32> to vector<1x1x128xf32>
      tpu.vector_store %arg9[%c0_46, %c0_47, %c0_48], %83 {strides = array<i32>} : memref<1x1x128xf32, #tpu.memory_space<vmem>>, vector<1x1x128xf32>,
    } else {
    }
    return
  }
  func.func @transform_0(%arg0: i32, %arg1: i32) -> (i32, i32, i32) {
    %c0_i32 = arith.constant 0 : i32
    %c0_i32_0 = arith.constant 0 : i32
    return %arg0, %arg1, %c0_i32 : i32, i32, i32
  }
  func.func @transform_1(%arg0: i32, %arg1: i32) -> (i32, i32) {
    %c0_i32 = arith.constant 0 : i32
    %c0_i32_0 = arith.constant 0 : i32
    %c0_i32_1 = arith.constant 0 : i32
    return %c0_i32, %c0_i32_0 : i32, i32
  }
  func.func @transform_2(%arg0: i32, %arg1: i32) -> (i32, i32) {
    %c0_i32 = arith.constant 0 : i32
    %c0_i32_0 = arith.constant 0 : i32
    %c0_i32_1 = arith.constant 0 : i32
    return %c0_i32, %c0_i32_0 : i32, i32
  }
  func.func @transform_3(%arg0: i32, %arg1: i32) -> (i32, i32, i32) {
    %c0_i32 = arith.constant 0 : i32
    %c0_i32_0 = arith.constant 0 : i32
    %c0_i32_1 = arith.constant 0 : i32
    %c0_i32_2 = arith.constant 0 : i32
    return %c0_i32, %c0_i32_0, %c0_i32_1 : i32, i32, i32
  }
  func.func @transform_4(%arg0: i32, %arg1: i32) -> (i32, i32, i32) {
    %c0_i32 = arith.constant 0 : i32
    %c0_i32_0 = arith.constant 0 : i32
    %c0_i32_1 = arith.constant 0 : i32
    %c0_i32_2 = arith.constant 0 : i32
    return %c0_i32, %c0_i32_0, %c0_i32_1 : i32, i32, i32
  }
  func.func @transform_5(%arg0: i32, %arg1: i32) -> (i32, i32) {
    %c0_i32 = arith.constant 0 : i32
    %c0_i32_0 = arith.constant 0 : i32
    %c0_i32_1 = arith.constant 0 : i32
    return %c0_i32, %c0_i32_0 : i32, i32
  }
  func.func @transform_6(%arg0: i32, %arg1: i32) -> (i32, i32) {
    %c0_i32 = arith.constant 0 : i32
    %c0_i32_0 = arith.constant 0 : i32
    %c0_i32_1 = arith.constant 0 : i32
    return %c0_i32, %c0_i32_0 : i32, i32
  }
  func.func @transform_7(%arg0: i32, %arg1: i32) -> (i32, i32, i32) {
    %c0_i32 = arith.constant 0 : i32
    %c0_i32_0 = arith.constant 0 : i32
    %c0_i32_1 = arith.constant 0 : i32
    return %arg0, %c0_i32, %c0_i32_0 : i32, i32, i32
  }
}

</mosaic_0001>

<llo_original>
// kernel: tpu_custom_call.1
$region0: #{tpu_custom_call.1}
  #allocation0 [shape = 'u32[]', space=smem, size = 0x4, offset = 0x4, fixed_abs, tag = 'smem constant byte address 0x4 - core index']
  #allocation1 [shape = 'u32[144,128]{1,0:T(1,128)}', space=vmem, size = 0x12000, scoped, tag = 'internal scratch']
  #allocation2 [shape = 'f32[8,128]{1,0:T(8,128)}', space=vmem, size = 0x1000, scoped, tag = 'scratch operand']
  %s0 = inlined_call_operand.vmem [shape: bf16[2,16,4], index: 0, kind: input, shape index: {}]
  %s1 = inlined_call_operand.vmem [shape: bf16[4,128], index: 1, kind: input, shape index: {}]
  %s2 = inlined_call_operand.vmem [shape: f32[1,128], index: 2, kind: input, shape index: {}]
  %s3 = inlined_call_operand.hbm [shape: bf16[2,128,128], index: 3, kind: input, shape index: {}]
  %s4 = inlined_call_operand.vmem [shape: f32[2,1,128], index: 4, kind: input, shape index: {}]
  %s5 = inlined_call_operand.hbm [shape: f32[128,128], index: 5, kind: input, shape index: {}]
  %s6 = inlined_call_operand.vmem [shape: f32[1,128], index: 6, kind: input, shape index: {}]
  %s7 = inlined_call_operand.hbm [shape: f32[2,1,128], index: 7, kind: output, shape index: {}]
  %s8 = sld [smem:[#allocation0]]
  $region85: #{tpu_custom_call.1} parent=0
    _
  %s10 = ssub.s32 1, %s8
  %s11 = scalar_select 0, %s10, %s8
  $region1: #{tpu_custom_call.1} parent=0
    #allocation3 [shape = 'u8[65536]{0}', space=vmem, size = 0x10000, scoped, tag = 'input window, operand 3, single buffered']
    #allocation4 [shape = 's32[2]{0}', space=sflag, size = 0x8, scoped, tag = 'scoped memory for tpu_custom_call.1']
    #allocation5 [shape = 's32[2]{0}', space=sflag, size = 0x8, scoped, tag = 'scoped memory for tpu_custom_call.1']
    #allocation6 [shape = 'u8[65536]{0}', space=vmem, size = 0x10000, scoped, tag = 'input window, operand 5, single buffered']
    #allocation7 [shape = 's32[1]{0}', space=sflag, size = 0x4, scoped, tag = 'scoped memory for tpu_custom_call.1']
    #allocation8 [shape = 'u8[1024]{0}', space=vmem, size = 0x400, scoped, tag = 'output window, operand 0']
    %12 = vsyncpa [#allocation4], 0
    %13 = vsyncpa [#allocation7], 0
    %14 = vsyncpa [#allocation5], 0
    %s15 = scalar_lea.sflag [#allocation5], 1
    %16 = vsyncpa %s15, 0
    loop: start=0, step=1, limit=4
    $region2: #{tpu_custom_call.1} parent=1 // loop_pre_header
      _
    $region3: #{tpu_custom_call.1} parent=1 // loop_header
      %s18 = sphi 0, %s22
      %p19 = scmp.ge.s32.totalorder %s18, 4
      %s25 = sphi 0, %s37
      %s26 = sphi 0, %s33
      %s27 = sphi 0, %s25
      %s28 = sphi 0, %s26
      %s29 = sphi 0, %s27
      %s30 = sphi 0, %s28
      %s42 = sphi 0, %s44
      %s45 = sphi 0, %s42
      %s46 = sphi 0, %s45
      %s62 = sphi 0, %s46
      %s66 = sphi 0, %s66
      %s68 = sphi 0, %s66
      %s69 = sphi 0, %s68
      %s83 = sphi 0, %s69
      %s87 = sphi 0, %s87
      %s89 = sphi 0, %s87
      %s90 = sphi 0, %s89
      %s104 = sphi 0, %s90
      %s108 = sphi 0, %s108
      %s110 = sphi 0, %s108
      %s111 = sphi 0, %s110
      %s125 = sphi 0, %s111
      %s129 = sphi 0, %s129
      %s131 = sphi 0, %s129
      %s132 = sphi 0, %s131
      %s146 = sphi 0, %s132
      %s150 = sphi 0, %s150
      %s152 = sphi 0, %s150
      %s153 = sphi 0, %s152
      %s167 = sphi 0, %s153
      %s171 = sphi 0, %s171
      %s173 = sphi 0, %s171
      %s174 = sphi 0, %s173
      %s188 = sphi 0, %s174
      %s194 = sphi 0, %s196
      %s197 = sphi 0, %s194
      %s198 = sphi 0, %s197
      %s214 = sphi 0, %s198
    $region4: #{tpu_custom_call.1} parent=1 // loop_header_branch
      %21 = sbr.rel (%p19) target = $region8
    $region5: #{tpu_custom_call.1} parent=1 // loop_body
      %s23 = ssub.s32 %s18, 1
      %s24 = ssub.s32 %s18, 2
      %s31 = sadd.s32 1, %s26
      %p32 = scmp.ge.s32.totalorder %s31, 1
      %s33 = scalar_select %p32, 0, %s31
      %s34 = sadd.s32 1, %s25
      %s35 = scalar_select %p32, %s34, %s25
      %p36 = scmp.ge.s32.totalorder %s35, 2
      %s37 = scalar_select %p36, 0, %s35
      %s38 = ssub.s32 %s25, %s37
      %s39 = ssub.s32 %s26, %s33
      %s40 = sor.u32 %s38, %s39
      %p41 = scmp.eq.s32.totalorder %s40, 0
      %s43 = sadd.s32 %s42, 1
      %s44 = scalar_select %p41, %s42, %s43
      %p47 = pneg %p41
      %p48 = scmp.eq.s32.totalorder %s18, 1
      %p49 = por %p47, %p48
      %p50 = scmp.ne.s32.totalorder %s42, %s45
      %p51 = scmp.eq.s32.totalorder %s18, 0
      %p52 = por %p50, %p51
      %p53 = scmp.ne.s32.totalorder %s42, %s45
      %p54 = scmp.eq.s32.totalorder %s23, 1
      %p55 = por %p53, %p54
      %p56 = scmp.ne.s32.totalorder %s45, %s46
      %p57 = scmp.eq.s32.totalorder %s23, 0
      %p58 = por %p56, %p57
      %p59 = scmp.ne.s32.totalorder %s45, %s46
      %p60 = scmp.eq.s32.totalorder %s24, 1
      %p61 = por %p59, %p60
      %p63 = scmp.ne.s32.totalorder %s46, %s62
      %p64 = scmp.eq.s32.totalorder %s24, 0
      %p65 = por %p63, %p64
      %s67 = sadd.s32 %s66, 1
      %p70 = scmp.eq.s32.totalorder %s18, 1
      %p71 = scmp.ne.s32.totalorder %s66, %s68
      %p72 = scmp.eq.s32.totalorder %s18, 0
      %p73 = por %p71, %p72
      %p74 = scmp.ne.s32.totalorder %s66, %s68
      %p75 = scmp.eq.s32.totalorder %s23, 1
      %p76 = por %p74, %p75
      %p77 = scmp.ne.s32.totalorder %s68, %s69
      %p78 = scmp.eq.s32.totalorder %s23, 0
      %p79 = por %p77, %p78
      %p80 = scmp.ne.s32.totalorder %s68, %s69
      %p81 = scmp.eq.s32.totalorder %s24, 1
      %p82 = por %p80, %p81
      %p84 = scmp.ne.s32.totalorder %s69, %s83
      %p85 = scmp.eq.s32.totalorder %s24, 0
      %p86 = por %p84, %p85
      %s88 = sadd.s32 %s87, 1
      %p91 = scmp.eq.s32.totalorder %s18, 1
      %p92 = scmp.ne.s32.totalorder %s87, %s89
      %p93 = scmp.eq.s32.totalorder %s18, 0
      %p94 = por %p92, %p93
      %p95 = scmp.ne.s32.totalorder %s87, %s89
      %p96 = scmp.eq.s32.totalorder %s23, 1
      %p97 = por %p95, %p96
      %p98 = scmp.ne.s32.totalorder %s89, %s90
      %p99 = scmp.eq.s32.totalorder %s23, 0
      %p100 = por %p98, %p99
      %p101 = scmp.ne.s32.totalorder %s89, %s90
      %p102 = scmp.eq.s32.totalorder %s24, 1
      %p103 = por %p101, %p102
      %p105 = scmp.ne.s32.totalorder %s90, %s104
      %p106 = scmp.eq.s32.totalorder %s24, 0
      %p107 = por %p105, %p106
      %s109 = sadd.s32 %s108, 1
      %p112 = scmp.eq.s32.totalorder %s18, 1
      %p113 = scmp.ne.s32.totalorder %s108, %s110
      %p114 = scmp.eq.s32.totalorder %s18, 0
      %p115 = por %p113, %p114
      %p116 = scmp.ne.s32.totalorder %s108, %s110
      %p117 = scmp.eq.s32.totalorder %s23, 1
      %p118 = por %p116, %p117
      %p119 = scmp.ne.s32.totalorder %s110, %s111
      %p120 = scmp.eq.s32.totalorder %s23, 0
      %p121 = por %p119, %p120
      %p122 = scmp.ne.s32.totalorder %s110, %s111
      %p123 = scmp.eq.s32.totalorder %s24, 1
      %p124 = por %p122, %p123
      %p126 = scmp.ne.s32.totalorder %s111, %s125
      %p127 = scmp.eq.s32.totalorder %s24, 0
      %p128 = por %p126, %p127
      %s130 = sadd.s32 %s129, 1
      %p133 = scmp.eq.s32.totalorder %s18, 1
      %p134 = scmp.ne.s32.totalorder %s129, %s131
      %p135 = scmp.eq.s32.totalorder %s18, 0
      %p136 = por %p134, %p135
      %p137 = scmp.ne.s32.totalorder %s129, %s131
      %p138 = scmp.eq.s32.totalorder %s23, 1
      %p139 = por %p137, %p138
      %p140 = scmp.ne.s32.totalorder %s131, %s132
      %p141 = scmp.eq.s32.totalorder %s23, 0
      %p142 = por %p140, %p141
      %p143 = scmp.ne.s32.totalorder %s131, %s132
      %p144 = scmp.eq.s32.totalorder %s24, 1
      %p145 = por %p143, %p144
      %p147 = scmp.ne.s32.totalorder %s132, %s146
      %p148 = scmp.eq.s32.totalorder %s24, 0
      %p149 = por %p147, %p148
      %s151 = sadd.s32 %s150, 1
      %p154 = scmp.eq.s32.totalorder %s18, 1
      %p155 = scmp.ne.s32.totalorder %s150, %s152
      %p156 = scmp.eq.s32.totalorder %s18, 0
      %p157 = por %p155, %p156
      %p158 = scmp.ne.s32.totalorder %s150, %s152
      %p159 = scmp.eq.s32.totalorder %s23, 1
      %p160 = por %p158, %p159
      %p161 = scmp.ne.s32.totalorder %s152, %s153
      %p162 = scmp.eq.s32.totalorder %s23, 0
      %p163 = por %p161, %p162
      %p164 = scmp.ne.s32.totalorder %s152, %s153
      %p165 = scmp.eq.s32.totalorder %s24, 1
      %p166 = por %p164, %p165
      %p168 = scmp.ne.s32.totalorder %s153, %s167
      %p169 = scmp.eq.s32.totalorder %s24, 0
      %p170 = por %p168, %p169
      %s172 = sadd.s32 %s171, 1
      %p175 = scmp.eq.s32.totalorder %s18, 1
      %p176 = scmp.ne.s32.totalorder %s171, %s173
      %p177 = scmp.eq.s32.totalorder %s18, 0
      %p178 = por %p176, %p177
      %p179 = scmp.ne.s32.totalorder %s171, %s173
      %p180 = scmp.eq.s32.totalorder %s23, 1
      %p181 = por %p179, %p180
      %p182 = scmp.ne.s32.totalorder %s173, %s174
      %p183 = scmp.eq.s32.totalorder %s23, 0
      %p184 = por %p182, %p183
      %p185 = scmp.ne.s32.totalorder %s173, %s174
      %p186 = scmp.eq.s32.totalorder %s24, 1
      %p187 = por %p185, %p186
      %p189 = scmp.ne.s32.totalorder %s174, %s188
      %p190 = scmp.eq.s32.totalorder %s24, 0
      %p191 = por %p189, %p190
      %s192 = ssub.s32 %s25, %s37
      %p193 = scmp.eq.s32.totalorder %s192, 0
      %s195 = sadd.s32 %s194, 1
      %s196 = scalar_select %p193, %s194, %s195
      %p199 = pneg %p193
      %p200 = scmp.eq.s32.totalorder %s18, 1
      %p201 = por %p199, %p200
      %p202 = scmp.ne.s32.totalorder %s194, %s197
      %p203 = scmp.eq.s32.totalorder %s18, 0
      %p204 = por %p202, %p203
      %p205 = scmp.ne.s32.totalorder %s194, %s197
      %p206 = scmp.eq.s32.totalorder %s23, 1
      %p207 = por %p205, %p206
      %p208 = scmp.ne.s32.totalorder %s197, %s198
      %p209 = scmp.eq.s32.totalorder %s23, 0
      %p210 = por %p208, %p209
      %p211 = scmp.ne.s32.totalorder %s197, %s198
      %p212 = scmp.eq.s32.totalorder %s24, 1
      %p213 = por %p211, %p212
      %p215 = scmp.ne.s32.totalorder %s198, %s214
      %p216 = scmp.eq.s32.totalorder %s24, 0
      %p217 = por %p215, %p216
      %p218 = scmp.le.s32.totalorder 1, %s18
      %p219 = scmp.lt.s32.totalorder %s18, 3
      %p220 = pnand %p218, %p219
      %p221 = pneg %p220
      // Predicated region
      $region9: #{tpu_custom_call.1} parent=5 // pred_check
        _
      $region10: #{tpu_custom_call.1} parent=5 // pred_check_branch
        %223 = sbr.rel (%p220) target = $region12
      $region11: #{tpu_custom_call.1} parent=5 // pred_region
        %s224 = ssub.s32 %s18, 1
        // Predicated region
        $region13: #{tpu_custom_call.1} parent=11 // pred_check
          %p225 = pneg %p79
        $region14: #{tpu_custom_call.1} parent=11 // pred_check_branch
          %227 = sbr.rel (%p225) target = $region16
        $region15: #{tpu_custom_call.1} parent=11 // pred_region
          _
        $region16: #{tpu_custom_call.1} parent=11 // pred_fallthru
          _
        // Predicated region
        $region17: #{tpu_custom_call.1} parent=11 // pred_check
          %p228 = pneg %p100
        $region18: #{tpu_custom_call.1} parent=11 // pred_check_branch
          %230 = sbr.rel (%p228) target = $region20
        $region19: #{tpu_custom_call.1} parent=11 // pred_region
          _
        $region20: #{tpu_custom_call.1} parent=11 // pred_fallthru
          _
        // Predicated region
        $region21: #{tpu_custom_call.1} parent=11 // pred_check
          %p231 = pneg %p121
        $region22: #{tpu_custom_call.1} parent=11 // pred_check_branch
          %233 = sbr.rel (%p231) target = $region24
        $region23: #{tpu_custom_call.1} parent=11 // pred_region
          %s235 = ssub.s32 2048, 2048
          %236 = vsyncadd [#allocation4], %s235
          %s237 = sshll.u32 [#allocation3], 4
          %s238 = int_to_ptr.vmem [resolvable:$true] %s237
          %243 = dma.hbm_to_vmem [thread:$0]  %s3, 2048, %s238, [#allocation4], 64, 64, 4
        $region24: #{tpu_custom_call.1} parent=11 // pred_fallthru
          _
        // Predicated region
        $region25: #{tpu_custom_call.1} parent=11 // pred_check
          %p244 = pneg %p142
        $region26: #{tpu_custom_call.1} parent=11 // pred_check_branch
          %246 = sbr.rel (%p244) target = $region28
        $region27: #{tpu_custom_call.1} parent=11 // pred_region
          _
        $region28: #{tpu_custom_call.1} parent=11 // pred_fallthru
          _
        // Predicated region
        $region29: #{tpu_custom_call.1} parent=11 // pred_check
          %p247 = pneg %p163
        $region30: #{tpu_custom_call.1} parent=11 // pred_check_branch
          %249 = sbr.rel (%p247) target = $region32
        $region31: #{tpu_custom_call.1} parent=11 // pred_region
          %s251 = ssub.s32 2048, 2048
          %252 = vsyncadd [#allocation7], %s251
          %s253 = sshll.u32 [#allocation6], 4
          %s254 = int_to_ptr.vmem [resolvable:$true] %s253
          %259 = dma.hbm_to_vmem [thread:$0]  %s5, 2048, %s254, [#allocation7], 128, 128, 8
        $region32: #{tpu_custom_call.1} parent=11 // pred_fallthru
          _
        // Predicated region
        $region33: #{tpu_custom_call.1} parent=11 // pred_check
          %p260 = pneg %p184
        $region34: #{tpu_custom_call.1} parent=11 // pred_check_branch
          %262 = sbr.rel (%p260) target = $region36
        $region35: #{tpu_custom_call.1} parent=11 // pred_region
          _
        $region36: #{tpu_custom_call.1} parent=11 // pred_fallthru
          _
      $region12: #{tpu_custom_call.1} parent=5 // pred_fallthru
        _
      %p263 = scmp.lt.s32.totalorder %s18, 2
      // Predicated region
      $region37: #{tpu_custom_call.1} parent=5 // pred_check
        %p264 = pneg %p263
      $region38: #{tpu_custom_call.1} parent=5 // pred_check_branch
        %266 = sbr.rel (%p264) target = $region40
      $region39: #{tpu_custom_call.1} parent=5 // pred_region
        // Predicated region
        $region41: #{tpu_custom_call.1} parent=39 // pred_check
          %p267 = pneg %p52
        $region42: #{tpu_custom_call.1} parent=39 // pred_check_branch
          %269 = sbr.rel (%p267) target = $region44
        $region43: #{tpu_custom_call.1} parent=39 // pred_region
          %s270 = smul.u32 2, %s26
          %p271 = scmp.lt.s32.totalorder %s25, 1
          %s272 = scalar_select %p271, %s25, 1
          %p273 = scmp.lt.s32.totalorder %s270, 1
          %s274 = scalar_select %p273, %s270, 1
          %s275 = smul.addr %s272, 2
          %s276 = sadd.s32 %s274, %s275
          %s277 = smul.addr %s276, 4
          %s278 = scalar_lea.vmem %s0, %s277
          %s279 = smul.u32 2, %s26
        $region44: #{tpu_custom_call.1} parent=39 // pred_fallthru
          _
      $region40: #{tpu_custom_call.1} parent=5 // pred_fallthru
        _
      %p280 = scmp.le.s32.totalorder 1, %s18
      %p281 = scmp.lt.s32.totalorder %s18, 3
      %p282 = pnand %p280, %p281
      %p283 = pneg %p282
      // Predicated region
      $region45: #{tpu_custom_call.1} parent=5 // pred_check
        _
      $region46: #{tpu_custom_call.1} parent=5 // pred_check_branch
        %285 = sbr.rel (%p282) target = $region48
      $region47: #{tpu_custom_call.1} parent=5 // pred_region
        %s286 = ssub.s32 %s18, 1
        // Predicated region
        $region49: #{tpu_custom_call.1} parent=47 // pred_check
          %p287 = pneg %p121
        $region50: #{tpu_custom_call.1} parent=47 // pred_check_branch
          %289 = sbr.rel (%p287) target = $region52
        $region51: #{tpu_custom_call.1} parent=47 // pred_region
          %290 = dma.done [#allocation4], 2048
        $region52: #{tpu_custom_call.1} parent=47 // pred_fallthru
          _
        // Predicated region
        $region53: #{tpu_custom_call.1} parent=47 // pred_check
          %p291 = pneg %p163
        $region54: #{tpu_custom_call.1} parent=47 // pred_check_branch
          %293 = sbr.rel (%p291) target = $region56
        $region55: #{tpu_custom_call.1} parent=47 // pred_region
          %294 = dma.done [#allocation7], 2048
        $region56: #{tpu_custom_call.1} parent=47 // pred_fallthru
          _
        %s295 = smul.u32 2, %s28
        %p296 = scmp.lt.s32.totalorder %s27, 1
        %s297 = scalar_select %p296, %s27, 1
        %p298 = scmp.lt.s32.totalorder %s295, 1
        %s299 = scalar_select %p298, %s295, 1
        %s300 = smul.addr %s297, 2
        %s301 = sadd.s32 %s299, %s300
        %s302 = smul.addr %s301, 4
        %s303 = scalar_lea.vmem %s0, %s302
        %p304 = pneg %p58
        %p305 = pneg %p55
        %p306 = pneg %p79
        %p307 = pneg %p76
        %p308 = pneg %p100
        %p309 = pneg %p97
        %p310 = pneg %p121
        %p311 = pneg %p118
        %p312 = pneg %p142
        %p313 = pneg %p139
        %p314 = pneg %p163
        %p315 = pneg %p160
        %p316 = pneg %p184
        %p317 = pneg %p181
        %p318 = pneg %p210
        %p319 = pneg %p207
        %s320 = sand.u32 %s197, 1
        %s321 = scalar_lea.sflag [#allocation5], %s320
        %s322 = sand.u32 %s197, 1
        %s323 = scalar_lea.vmem [#allocation8], %s322
        %s324 = smul.u32 2, %s28
        %p325 = scmp.lt.s32.totalorder %s27, 1
        %s326 = scalar_select %p325, %s27, 1
        %p327 = scmp.lt.s32.totalorder %s324, 1
        %s328 = scalar_select %p327, %s324, 1
        %s329 = smul.addr %s326, 2
        %s330 = sadd.s32 %s328, %s329
        %s331 = smul.addr %s330, 4
        %s332 = scalar_lea.vmem %s0, %s331
        %s333 = smul.u32 2, %s28
        %p335 = scmp.eq.s32.totalorder %s28, 0
        // Predicated region
        $region57: #{tpu_custom_call.1} parent=47 // pred_check
          %p336 = pneg %p335
        $region58: #{tpu_custom_call.1} parent=47 // pred_check_branch
          %338 = sbr.rel (%p336) target = $region60
        $region59: #{tpu_custom_call.1} parent=47 // pred_region
          %339 = vst [vmem:[#allocation2] sm:$0xff] 0.0
        $region60: #{tpu_custom_call.1} parent=47 // pred_fallthru
          _
        %v340 = vld [vmem:[%s332] sm:$0xf]
        %v341 = vld [vmem:[%s332 + $0x4] sm:$0xf]
        %v342 = vld [vmem:[%s1] sm:$0x3]
        %v343 = vld [vmem:[%s2] sm:$0x1]
        %v345 = vlaneseq
        %v346 = vshrl.u32 %v345, 7
        %v347 = vsub.s32 0, %v346
        %v348 = vrot.slane %v343, %v347
        %v352 = vunpack.c.l.b16 %v340
        %v353 = vunpack.c.l.b16 %v341
        %v354 = vpack.c.b16 %v353, %v352
        %vm355 = vcmask 31744
        %v357 = vsel %vm355, %v354, 0
        %vm359 = vcmask 1041408
        %v361 = vsel %vm359, %v342, 0
        %363 = vmatprep.subr.bf16.mxu0 0
        %364 = vmatpush1.bf16.msra.mxu0 %v361
        %365 = vmatprep.subr.bf16.mxu0 0
        %366 = vmatpush1.bf16.msra.mxu0 0
        %367 = vmatprep.subr.bf16.mxu0 0
        %368 = vmatpush1.bf16.msra.mxu0 0
        %369 = vmatprep.subr.bf16.mxu0 0
        %370 = vmatpush1.bf16.msra.mxu0 0
        %371 = vmatprep.subr.bf16.mxu0 0
        %372 = vmatpush1.bf16.msra.mxu0 0
        %373 = vmatprep.subr.bf16.mxu0 0
        %374 = vmatpush1.bf16.msra.mxu0 0
        %375 = vmatprep.subr.bf16.mxu0 0
        %376 = vmatpush1.bf16.msra.mxu0 0
        %377 = vmatprep.subr.bf16.mxu0 0
        %378 = vmatpush1.bf16.msra.mxu0 0
        %379 = vmatprep.subr.bf16.mxu0 0
        %380 = vmatpush1.bf16.msra.mxu0 0
        %381 = vmatprep.subr.bf16.mxu0 0
        %382 = vmatpush1.bf16.msra.mxu0 0
        %383 = vmatprep.subr.bf16.mxu0 0
        %384 = vmatpush1.bf16.msra.mxu0 0
        %385 = vmatprep.subr.bf16.mxu0 0
        %386 = vmatpush1.bf16.msra.mxu0 0
        %387 = vmatprep.subr.bf16.mxu0 0
        %388 = vmatpush1.bf16.msra.mxu0 0
        %389 = vmatprep.subr.bf16.mxu0 0
        %390 = vmatpush1.bf16.msra.mxu0 0
        %391 = vmatprep.subr.bf16.mxu0 0
        %392 = vmatpush1.bf16.msra.mxu0 0
        %393 = vmatprep.subr.bf16.mxu0 0
        %394 = vmatpush1.bf16.msra.mxu0 0
        %395 = vmatprep.mubr.bf16.mxu0 0
        %396 = vmatmul.mubr.bf16.gmra.mrb[0].mxu0 %v357
        %v397 = vpop.f32.mrb[0].mxu0
        %v398 = vadd.f32 %v348, %v397
        %v399 = vpop.f32.mrb[0].mxu0
        %v400 = vpop.f32.mrb[0].mxu0
        %v401 = vadd.f32 %v348, %v400
        %v402 = vpop.f32.mrb[0].mxu0
        %403 = vdwg.mxu0
        %v404 = vmul.f32 %v398, %v398
        %v405 = vmul.f32 %v401, %v401
        %v406 = vmul.f32 %v398, %v404
        %v407 = vmul.f32 %v401, %v405
        %v408 = vmul.f32 %v406, 0.044715
        %v409 = vmul.f32 %v407, 0.044715
        %v410 = vadd.f32 %v398, %v408
        %v411 = vadd.f32 %v401, %v409
        %v412 = vmul.f32 %v410, 0.7978846
        %v413 = vmul.f32 %v411, 0.7978846
        %v414 = vtanh.pop %v412
        %v415 = vtanh.pop %v413
        %v416 = vadd.f32 %v414, 1.0
        %v417 = vadd.f32 %v415, 1.0
        %v418 = vmul.f32 %v416, 0.5
        %v419 = vmul.f32 %v417, 0.5
        %v420 = vmul.f32 %v398, %v418
        %v421 = vmul.f32 %v401, %v419
        %v422 = vpack.c.bf16 %v421, %v420
        %v423 = vld [vmem:[#allocation3] sm:$0xf]
        %v424 = vld [vmem:[#allocation3 + $0x4] sm:$0xf]
        %v425 = vld [vmem:[#allocation3 + $0x8] sm:$0xf]
        %v426 = vld [vmem:[#allocation3 + $0xc] sm:$0xf]
        %v427 = vld [vmem:[#allocation3 + $0x10] sm:$0xf]
        %v428 = vld [vmem:[#allocation3 + $0x14] sm:$0xf]
        %v429 = vld [vmem:[#allocation3 + $0x18] sm:$0xf]
        %v430 = vld [vmem:[#allocation3 + $0x1c] sm:$0xf]
        %v431 = vld [vmem:[#allocation3 + $0x20] sm:$0xf]
        %v432 = vld [vmem:[#allocation3 + $0x24] sm:$0xf]
        %v433 = vld [vmem:[#allocation3 + $0x28] sm:$0xf]
        %v434 = vld [vmem:[#allocation3 + $0x2c] sm:$0xf]
        %v435 = vld [vmem:[#allocation3 + $0x30] sm:$0xf]
        %v436 = vld [vmem:[#allocation3 + $0x34] sm:$0xf]
        %v437 = vld [vmem:[#allocation3 + $0x38] sm:$0xf]
        %v438 = vld [vmem:[#allocation3 + $0x3c] sm:$0xf]
        %v439 = vld [vmem:[%s4] sm:$0x1]
        %v441 = vlaneseq
        %v442 = vshrl.u32 %v441, 7
        %v443 = vsub.s32 0, %v442
        %v444 = vrot.slane %v439, %v443
        %v462 = vunpack.c.l.b16 %v423
        %v463 = vunpack.c.l.b16 %v424
        %v464 = vunpack.c.l.b16 %v425
        %v465 = vunpack.c.l.b16 %v426
        %v466 = vunpack.c.l.b16 %v427
        %v467 = vunpack.c.l.b16 %v428
        %v468 = vunpack.c.l.b16 %v429
        %v469 = vunpack.c.l.b16 %v430
        %v470 = vunpack.c.l.b16 %v431
        %v471 = vunpack.c.l.b16 %v432
        %v472 = vunpack.c.l.b16 %v433
        %v473 = vunpack.c.l.b16 %v434
        %v474 = vunpack.c.l.b16 %v435
        %v475 = vunpack.c.l.b16 %v436
        %v476 = vunpack.c.l.b16 %v437
        %v477 = vunpack.c.l.b16 %v438
        %v478 = vpack.c.b16 %v463, %v462
        %v479 = vpack.c.b16 %v465, %v464
        %v480 = vpack.c.b16 %v467, %v466
        %v481 = vpack.c.b16 %v469, %v468
        %v482 = vpack.c.b16 %v471, %v470
        %v483 = vpack.c.b16 %v473, %v472
        %v484 = vpack.c.b16 %v475, %v474
        %v485 = vpack.c.b16 %v477, %v476
        %494 = vmatprep.subr.bf16.mxu0 0
        %495 = vmatpush1.bf16.msra.mxu0 %v478
        %496 = vmatprep.subr.bf16.mxu0 0
        %497 = vmatpush1.bf16.msra.mxu0 %v479
        %498 = vmatprep.subr.bf16.mxu0 0
        %499 = vmatpush1.bf16.msra.mxu0 %v480
        %500 = vmatprep.subr.bf16.mxu0 0
        %501 = vmatpush1.bf16.msra.mxu0 %v481
        %502 = vmatprep.subr.bf16.mxu0 0
        %503 = vmatpush1.bf16.msra.mxu0 %v482
        %504 = vmatprep.subr.bf16.mxu0 0
        %505 = vmatpush1.bf16.msra.mxu0 %v483
        %506 = vmatprep.subr.bf16.mxu0 0
        %507 = vmatpush1.bf16.msra.mxu0 %v484
        %508 = vmatprep.subr.bf16.mxu0 0
        %509 = vmatpush1.bf16.msra.mxu0 %v485
        %510 = vmatprep.subr.bf16.mxu0 0
        %511 = vmatpush1.bf16.msra.mxu0 0
        %512 = vmatprep.subr.bf16.mxu0 0
        %513 = vmatpush1.bf16.msra.mxu0 0
        %514 = vmatprep.subr.bf16.mxu0 0
        %515 = vmatpush1.bf16.msra.mxu0 0
        %516 = vmatprep.subr.bf16.mxu0 0
        %517 = vmatpush1.bf16.msra.mxu0 0
        %518 = vmatprep.subr.bf16.mxu0 0
        %519 = vmatpush1.bf16.msra.mxu0 0
        %520 = vmatprep.subr.bf16.mxu0 0
        %521 = vmatpush1.bf16.msra.mxu0 0
        %522 = vmatprep.subr.bf16.mxu0 0
        %523 = vmatpush1.bf16.msra.mxu0 0
        %524 = vmatprep.subr.bf16.mxu0 0
        %525 = vmatpush1.bf16.msra.mxu0 0
        %526 = vmatprep.mubr.bf16.mxu0 0
        %527 = vmatmul.mubr.bf16.gmra.mrb[0].mxu0 %v422
        %v528 = vpop.f32.mrb[0].mxu0
        %v529 = vadd.f32 %v444, %v528
        %v530 = vpop.f32.mrb[0].mxu0
        %v531 = vpop.f32.mrb[0].mxu0
        %v532 = vadd.f32 %v444, %v531
        %v533 = vpop.f32.mrb[0].mxu0
        %534 = vdwg.mxu0
        %v535 = vmul.f32 %v529, %v529
        %v536 = vmul.f32 %v532, %v532
        %v537 = vmul.f32 %v529, %v535
        %v538 = vmul.f32 %v532, %v536
        %v539 = vmul.f32 %v537, 0.044715
        %v540 = vmul.f32 %v538, 0.044715
        %v541 = vadd.f32 %v529, %v539
        %v542 = vadd.f32 %v532, %v540
        %v543 = vmul.f32 %v541, 0.7978846
        %v544 = vmul.f32 %v542, 0.7978846
        %v545 = vtanh.pop %v543
        %v546 = vtanh.pop %v544
        %v547 = vadd.f32 %v545, 1.0
        %v548 = vadd.f32 %v546, 1.0
        %v549 = vmul.f32 %v547, 0.5
        %v550 = vmul.f32 %v548, 0.5
        %v551 = vmul.f32 %v529, %v549
        %v552 = vmul.f32 %v532, %v550
        %v553 = vpack.c.bf16 %v552, %v551
        %s554 = scalar_lea.vmem [#allocation3], 64
        %v555 = vld [vmem:[%s554] sm:$0xf]
        %v556 = vld [vmem:[%s554 + $0x4] sm:$0xf]
        %v557 = vld [vmem:[%s554 + $0x8] sm:$0xf]
        %v558 = vld [vmem:[%s554 + $0xc] sm:$0xf]
        %v559 = vld [vmem:[%s554 + $0x10] sm:$0xf]
        %v560 = vld [vmem:[%s554 + $0x14] sm:$0xf]
        %v561 = vld [vmem:[%s554 + $0x18] sm:$0xf]
        %v562 = vld [vmem:[%s554 + $0x1c] sm:$0xf]
        %v563 = vld [vmem:[%s554 + $0x20] sm:$0xf]
        %v564 = vld [vmem:[%s554 + $0x24] sm:$0xf]
        %v565 = vld [vmem:[%s554 + $0x28] sm:$0xf]
        %v566 = vld [vmem:[%s554 + $0x2c] sm:$0xf]
        %v567 = vld [vmem:[%s554 + $0x30] sm:$0xf]
        %v568 = vld [vmem:[%s554 + $0x34] sm:$0xf]
        %v569 = vld [vmem:[%s554 + $0x38] sm:$0xf]
        %v570 = vld [vmem:[%s554 + $0x3c] sm:$0xf]
        %s571 = scalar_lea.vmem %s4, 1
        %v572 = vld [vmem:[%s571] sm:$0x1]
        %v574 = vlaneseq
        %v575 = vshrl.u32 %v574, 7
        %v576 = vsub.s32 0, %v575
        %v577 = vrot.slane %v572, %v576
        %v595 = vunpack.c.l.b16 %v555
        %v596 = vunpack.c.l.b16 %v556
        %v597 = vunpack.c.l.b16 %v557
        %v598 = vunpack.c.l.b16 %v558
        %v599 = vunpack.c.l.b16 %v559
        %v600 = vunpack.c.l.b16 %v560
        %v601 = vunpack.c.l.b16 %v561
        %v602 = vunpack.c.l.b16 %v562
        %v603 = vunpack.c.l.b16 %v563
        %v604 = vunpack.c.l.b16 %v564
        %v605 = vunpack.c.l.b16 %v565
        %v606 = vunpack.c.l.b16 %v566
        %v607 = vunpack.c.l.b16 %v567
        %v608 = vunpack.c.l.b16 %v568
        %v609 = vunpack.c.l.b16 %v569
        %v610 = vunpack.c.l.b16 %v570
        %v611 = vpack.c.b16 %v596, %v595
        %v612 = vpack.c.b16 %v598, %v597
        %v613 = vpack.c.b16 %v600, %v599
        %v614 = vpack.c.b16 %v602, %v601
        %v615 = vpack.c.b16 %v604, %v603
        %v616 = vpack.c.b16 %v606, %v605
        %v617 = vpack.c.b16 %v608, %v607
        %v618 = vpack.c.b16 %v610, %v609
        %627 = vmatprep.subr.bf16.mxu0 0
        %628 = vmatpush1.bf16.msra.mxu0 %v611
        %629 = vmatprep.subr.bf16.mxu0 0
        %630 = vmatpush1.bf16.msra.mxu0 %v612
        %631 = vmatprep.subr.bf16.mxu0 0
        %632 = vmatpush1.bf16.msra.mxu0 %v613
        %633 = vmatprep.subr.bf16.mxu0 0
        %634 = vmatpush1.bf16.msra.mxu0 %v614
        %635 = vmatprep.subr.bf16.mxu0 0
        %636 = vmatpush1.bf16.msra.mxu0 %v615
        %637 = vmatprep.subr.bf16.mxu0 0
        %638 = vmatpush1.bf16.msra.mxu0 %v616
        %639 = vmatprep.subr.bf16.mxu0 0
        %640 = vmatpush1.bf16.msra.mxu0 %v617
        %641 = vmatprep.subr.bf16.mxu0 0
        %642 = vmatpush1.bf16.msra.mxu0 %v618
        %643 = vmatprep.subr.bf16.mxu0 0
        %644 = vmatpush1.bf16.msra.mxu0 0
        %645 = vmatprep.subr.bf16.mxu0 0
        %646 = vmatpush1.bf16.msra.mxu0 0
        %647 = vmatprep.subr.bf16.mxu0 0
        %648 = vmatpush1.bf16.msra.mxu0 0
        %649 = vmatprep.subr.bf16.mxu0 0
        %650 = vmatpush1.bf16.msra.mxu0 0
        %651 = vmatprep.subr.bf16.mxu0 0
        %652 = vmatpush1.bf16.msra.mxu0 0
        %653 = vmatprep.subr.bf16.mxu0 0
        %654 = vmatpush1.bf16.msra.mxu0 0
        %655 = vmatprep.subr.bf16.mxu0 0
        %656 = vmatpush1.bf16.msra.mxu0 0
        %657 = vmatprep.subr.bf16.mxu0 0
        %658 = vmatpush1.bf16.msra.mxu0 0
        %659 = vmatprep.mubr.bf16.mxu0 0
        %660 = vmatmul.mubr.bf16.gmra.mrb[0].mxu0 %v553
        %v661 = vpop.f32.mrb[0].mxu0
        %v662 = vadd.f32 %v577, %v661
        %v663 = vpop.f32.mrb[0].mxu0
        %v664 = vpop.f32.mrb[0].mxu0
        %v665 = vadd.f32 %v577, %v664
        %v666 = vpop.f32.mrb[0].mxu0
        %667 = vdwg.mxu0
        %v668 = vmul.f32 %v662, %v662
        %v669 = vmul.f32 %v665, %v665
        %v670 = vmul.f32 %v662, %v668
        %v671 = vmul.f32 %v665, %v669
        %v672 = vmul.f32 %v670, 0.044715
        %v673 = vmul.f32 %v671, 0.044715
        %v674 = vadd.f32 %v662, %v672
        %v675 = vadd.f32 %v665, %v673
        %v676 = vmul.f32 %v674, 0.7978846
        %v677 = vmul.f32 %v675, 0.7978846
        %v678 = vtanh.pop %v676
        %v679 = vtanh.pop %v677
        %v680 = vadd.f32 %v678, 1.0
        %v681 = vadd.f32 %v679, 1.0
        %v682 = vmul.f32 %v680, 0.5
        %v683 = vmul.f32 %v681, 0.5
        %v684 = vmul.f32 %v662, %v682
        %v685 = vmul.f32 %v665, %v683
        // Predicated region
        $region61: #{tpu_custom_call.1} parent=47 // pred_check
          %p686 = pneg %p335
        $region62: #{tpu_custom_call.1} parent=47 // pred_check_branch
          %688 = sbr.rel (%p686) target = $region64
        $region63: #{tpu_custom_call.1} parent=47 // pred_region
          %s689 = smul.u32 %s28, 16
          %v690 = vlaneseq
          %v691 = vshrl.u32 %v690, 7
          %v692 = vadd.s32 %v691, 8
          %v693 = vstv %s689
          %v694 = vadd.s32 %v693, %v691
          %v695 = vadd.s32 %v693, %v692
          %vm696 = vcmp.lt.s32.totalorder %v694, 4
          %vm697 = vcmp.lt.s32.totalorder %v695, 4
          %v698 = vsel %vm696, 1, 0
          %v699 = vsel %vm697, 1, 0
          %vm700 = vcmp.eq.s32.totalorder %v698, 1
          %vm701 = vcmp.eq.s32.totalorder %v699, 1
          %v702 = vsel %vm700, %v684, 0.0
          %v703 = vsel %vm701, %v685, 0.0
          %v704 = vld [vmem:[#allocation2] sm:$0xff]
          %v705 = vadd.f32 %v702, %v703
          %v706 = vadd.f32 %v704, %v705
          %707 = vst [vmem:[#allocation2] sm:$0xff] %v706
        $region64: #{tpu_custom_call.1} parent=47 // pred_fallthru
          _
        %p708 = scmp.ne.s32.totalorder %s28, 0
        // Predicated region
        $region65: #{tpu_custom_call.1} parent=47 // pred_check
          %p709 = pneg %p708
        $region66: #{tpu_custom_call.1} parent=47 // pred_check_branch
          %711 = sbr.rel (%p709) target = $region68
        $region67: #{tpu_custom_call.1} parent=47 // pred_region
          %v712 = vld [vmem:[#allocation2] sm:$0xff]
          %v713 = vadd.f32 %v684, %v685
          %v714 = vadd.f32 %v712, %v713
          %715 = vst [vmem:[#allocation2] sm:$0xff] %v714
        $region68: #{tpu_custom_call.1} parent=47 // pred_fallthru
          _
        // Predicated region
        $region69: #{tpu_custom_call.1} parent=47 // pred_check
          %p716 = pneg %p335
        $region70: #{tpu_custom_call.1} parent=47 // pred_check_branch
          %718 = sbr.rel (%p716) target = $region72
        $region71: #{tpu_custom_call.1} parent=47 // pred_region
          %v719 = vld [vmem:[#allocation2] sm:$0xff]
          %v720 = vrot.slane %v719, 4
          %v721 = vadd.f32 %v719, %v720
          %v722 = vrot.slane %v721, 2
          %v723 = vadd.f32 %v721, %v722
          %v724 = vrot.slane %v723, 1
          %v725 = vadd.f32 %v723, %v724
          %v726 = vld [vmem:[#allocation6] sm:$0xff]
          %v727 = vld [vmem:[#allocation6 + $0x8] sm:$0xff]
          %v728 = vld [vmem:[#allocation6 + $0x10] sm:$0xff]
          %v729 = vld [vmem:[#allocation6 + $0x18] sm:$0xff]
          %v730 = vld [vmem:[#allocation6 + $0x20] sm:$0xff]
          %v731 = vld [vmem:[#allocation6 + $0x28] sm:$0xff]
          %v732 = vld [vmem:[#allocation6 + $0x30] sm:$0xff]
          %v733 = vld [vmem:[#allocation6 + $0x38] sm:$0xff]
          %v734 = vld [vmem:[#allocation6 + $0x40] sm:$0xff]
          %v735 = vld [vmem:[#allocation6 + $0x48] sm:$0xff]
          %v736 = vld [vmem:[#allocation6 + $0x50] sm:$0xff]
          %v737 = vld [vmem:[#allocation6 + $0x58] sm:$0xff]
          %v738 = vld [vmem:[#allocation6 + $0x60] sm:$0xff]
          %v739 = vld [vmem:[#allocation6 + $0x68] sm:$0xff]
          %v740 = vld [vmem:[#allocation6 + $0x70] sm:$0xff]
          %v741 = vld [vmem:[#allocation6 + $0x78] sm:$0xff]
          %v742 = vld [vmem:[%s6] sm:$0x1]
          %743 = vmatprep.subr.mxu0 0.0
          %744 = vmatpush1.msra.mxu0 %v726
          %745 = vmatprep.subr.mxu0 0.0
          %746 = vmatpush1.msra.mxu0 %v727
          %747 = vmatprep.subr.mxu0 0.0
          %748 = vmatpush1.msra.mxu0 %v728
          %749 = vmatprep.subr.mxu0 0.0
          %750 = vmatpush1.msra.mxu0 %v729
          %751 = vmatprep.subr.mxu0 0.0
          %752 = vmatpush1.msra.mxu0 %v730
          %753 = vmatprep.subr.mxu0 0.0
          %754 = vmatpush1.msra.mxu0 %v731
          %755 = vmatprep.subr.mxu0 0.0
          %756 = vmatpush1.msra.mxu0 %v732
          %757 = vmatprep.subr.mxu0 0.0
          %758 = vmatpush1.msra.mxu0 %v733
          %759 = vmatprep.subr.mxu0 0.0
          %760 = vmatpush1.msra.mxu0 %v734
          %761 = vmatprep.subr.mxu0 0.0
          %762 = vmatpush1.msra.mxu0 %v735
          %763 = vmatprep.subr.mxu0 0.0
          %764 = vmatpush1.msra.mxu0 %v736
          %765 = vmatprep.subr.mxu0 0.0
          %766 = vmatpush1.msra.mxu0 %v737
          %767 = vmatprep.subr.mxu0 0.0
          %768 = vmatpush1.msra.mxu0 %v738
          %769 = vmatprep.subr.mxu0 0.0
          %770 = vmatpush1.msra.mxu0 %v739
          %771 = vmatprep.subr.mxu0 0.0
          %772 = vmatpush1.msra.mxu0 %v740
          %773 = vmatprep.subr.mxu0 0.0
          %774 = vmatpush1.msra.mxu0 %v741
          %775 = vmatprep.subr.mxu0 0.0
          %776 = vmatpush1.msra.mxu0 0.0
          %777 = vmatprep.subr.mxu0 0.0
          %778 = vmatpush1.msra.mxu0 0.0
          %779 = vmatprep.subr.mxu0 0.0
          %780 = vmatpush1.msra.mxu0 0.0
          %781 = vmatprep.subr.mxu0 0.0
          %782 = vmatpush1.msra.mxu0 0.0
          %783 = vmatprep.subr.mxu0 0.0
          %784 = vmatpush1.msra.mxu0 0.0
          %785 = vmatprep.subr.mxu0 0.0
          %786 = vmatpush1.msra.mxu0 0.0
          %787 = vmatprep.subr.mxu0 0.0
          %788 = vmatpush1.msra.mxu0 0.0
          %789 = vmatprep.subr.mxu0 0.0
          %790 = vmatpush1.msra.mxu0 0.0
          %791 = vmatprep.subr.mxu0 0.0
          %792 = vmatpush1.msra.mxu0 0.0
          %793 = vmatprep.subr.mxu0 0.0
          %794 = vmatpush1.msra.mxu0 0.0
          %795 = vmatprep.subr.mxu0 0.0
          %796 = vmatpush1.msra.mxu0 0.0
          %797 = vmatprep.subr.mxu0 0.0
          %798 = vmatpush1.msra.mxu0 0.0
          %799 = vmatprep.subr.mxu0 0.0
          %800 = vmatpush1.msra.mxu0 0.0
          %801 = vmatprep.subr.mxu0 0.0
          %802 = vmatpush1.msra.mxu0 0.0
          %803 = vmatprep.subr.mxu0 0.0
          %804 = vmatpush1.msra.mxu0 0.0
          %805 = vmatprep.subr.mxu0 0.0
          %806 = vmatpush1.msra.mxu0 0.0
          %807 = vmatprep.mubr.f32.mxu0 0.0
          %808 = vmatmul.mubr.f32.gmra.mrb[0].mxu0 %v725
          %v809 = vpop.f32.mrb[0].mxu0
          %v810 = vadd.f32 %v742, %v809
          %v811 = vpop.f32.mrb[0].mxu0
          %812 = vdwg.mxu0
          %813 = vst [vmem:[%s323] sm:$0x1] %v810
        $region72: #{tpu_custom_call.1} parent=47 // pred_fallthru
          _
        %s814 = sand.u32 %s197, 1
        %s815 = scalar_lea.sflag [#allocation5], %s814
        %s816 = sand.u32 %s197, 1
        %s817 = scalar_lea.vmem [#allocation8], %s816
        // Predicated region
        $region73: #{tpu_custom_call.1} parent=47 // pred_check
          %p818 = pneg %p207
        $region74: #{tpu_custom_call.1} parent=47 // pred_check_branch
          %820 = sbr.rel (%p818) target = $region76
        $region75: #{tpu_custom_call.1} parent=47 // pred_region
          %s822 = ssub.s32 16, 16
          %823 = vsyncadd %s815, %s822
          %s824 = smul.addr %s27, 16
          %s825 = scalar_lea.hbm %s7, %s824
          %s827 = sshll.u32 %s817, 4
          %s828 = int_to_ptr.vmem [resolvable:$true] %s827
          %830 = dma.vmem_to_hbm [thread:$0]  %s828, 16, %s825, %s815
        $region76: #{tpu_custom_call.1} parent=47 // pred_fallthru
          _
      $region48: #{tpu_custom_call.1} parent=5 // pred_fallthru
        _
      %p831 = scmp.le.s32.totalorder 2, %s18
      // Predicated region
      $region77: #{tpu_custom_call.1} parent=5 // pred_check
        %p832 = pneg %p831
      $region78: #{tpu_custom_call.1} parent=5 // pred_check_branch
        %834 = sbr.rel (%p832) target = $region80
      $region79: #{tpu_custom_call.1} parent=5 // pred_region
        %s835 = ssub.s32 %s18, 2
        // Predicated region
        $region81: #{tpu_custom_call.1} parent=79 // pred_check
          %p836 = pneg %p213
        $region82: #{tpu_custom_call.1} parent=79 // pred_check_branch
          %838 = sbr.rel (%p836) target = $region84
        $region83: #{tpu_custom_call.1} parent=79 // pred_region
          %s839 = sand.u32 %s198, 1
          %s840 = scalar_lea.sflag [#allocation5], %s839
          %s841 = sand.u32 %s198, 1
          %s842 = scalar_lea.vmem [#allocation8], %s841
          %843 = dma.done %s840, 16
        $region84: #{tpu_custom_call.1} parent=79 // pred_fallthru
          _
      $region80: #{tpu_custom_call.1} parent=5 // pred_fallthru
        _
    $region6: #{tpu_custom_call.1} parent=1 // loop_footer
      %s22 = sadd.s32 1, %s18
    $region7: #{tpu_custom_call.1} parent=1 // loop_footer_branch
      %17 = sbr.rel target = $region3
    $region8: #{tpu_custom_call.1} parent=1 // loop_exit
      _
    %844 = vsyncpa [#allocation4], 1
    %s845 = scalar_lea.sflag [#allocation4], 1
    %846 = vsyncpa %s845, 1
    %847 = vsyncpa [#allocation7], 1
    %848 = vsyncpa [#allocation5], 1
    %s849 = scalar_lea.sflag [#allocation5], 1
    %850 = vsyncpa %s849, 1

// kernel: tpu_custom_call.1
$region0: #{tpu_custom_call.1}
  #allocation0 [shape = 'u32[]', space=smem, size = 0x4, offset = 0x4, fixed_abs, tag = 'smem constant byte address 0x4 - core index']
  #allocation1 [shape = 'u32[144,128]{1,0:T(1,128)}', space=vmem, size = 0x12000, scoped, tag = 'internal scratch']
  #allocation2 [shape = 'f32[8,128]{1,0:T(8,128)}', space=vmem, size = 0x1000, scoped, tag = 'scratch operand']
  %s0 = inlined_call_operand.vmem [shape: bf16[2,16,4], index: 0, kind: input, shape index: {}]
  %s1 = inlined_call_operand.vmem [shape: bf16[4,128], index: 1, kind: input, shape index: {}]
  %s2 = inlined_call_operand.vmem [shape: f32[1,128], index: 2, kind: input, shape index: {}]
  %s3 = inlined_call_operand.hbm [shape: bf16[2,128,128], index: 3, kind: input, shape index: {}]
  %s4 = inlined_call_operand.vmem [shape: f32[2,1,128], index: 4, kind: input, shape index: {}]
  %s5 = inlined_call_operand.hbm [shape: f32[128,128], index: 5, kind: input, shape index: {}]
  %s6 = inlined_call_operand.vmem [shape: f32[1,128], index: 6, kind: input, shape index: {}]
  %s7 = inlined_call_operand.hbm [shape: f32[2,1,128], index: 7, kind: output, shape index: {}]
  %s8 = sld [smem:[#allocation0]]
  $region85: #{tpu_custom_call.1} parent=0
    _
  %s10 = ssub.s32 1, %s8
  %s11 = scalar_select 0, %s10, %s8
  $region1: #{tpu_custom_call.1} parent=0
    #allocation3 [shape = 'u8[65536]{0}', space=vmem, size = 0x10000, scoped, tag = 'input window, operand 3, single buffered']
    #allocation4 [shape = 's32[2]{0}', space=sflag, size = 0x8, scoped, tag = 'scoped memory for tpu_custom_call.1']
    #allocation5 [shape = 's32[2]{0}', space=sflag, size = 0x8, scoped, tag = 'scoped memory for tpu_custom_call.1']
    #allocation6 [shape = 'u8[65536]{0}', space=vmem, size = 0x10000, scoped, tag = 'input window, operand 5, single buffered']
    #allocation7 [shape = 's32[1]{0}', space=sflag, size = 0x4, scoped, tag = 'scoped memory for tpu_custom_call.1']
    #allocation8 [shape = 'u8[1024]{0}', space=vmem, size = 0x400, scoped, tag = 'output window, operand 0']
    %12 = vsyncpa [#allocation4], 0
    %13 = vsyncpa [#allocation7], 0
    %14 = vsyncpa [#allocation5], 0
    %s15 = scalar_lea.sflag [#allocation5], 1
    %16 = vsyncpa %s15, 0
    loop: start=0, step=1, limit=4
    $region2: #{tpu_custom_call.1} parent=1 // loop_pre_header
      _
    $region3: #{tpu_custom_call.1} parent=1 // loop_header
      %s18 = sphi 0, %s22
      %p19 = scmp.ge.s32.totalorder %s18, 4
      %s25 = sphi 0, %s37
      %s26 = sphi 0, %s33
      %s27 = sphi 0, %s25
      %s28 = sphi 0, %s26
      %s29 = sphi 0, %s27
      %s30 = sphi 0, %s28
      %s42 = sphi 0, %s44
      %s45 = sphi 0, %s42
      %s46 = sphi 0, %s45
      %s62 = sphi 0, %s46
      %s66 = sphi 0, %s66
      %s68 = sphi 0, %s66
      %s69 = sphi 0, %s68
      %s83 = sphi 0, %s69
      %s87 = sphi 0, %s87
      %s89 = sphi 0, %s87
      %s90 = sphi 0, %s89
      %s104 = sphi 0, %s90
      %s108 = sphi 0, %s108
      %s110 = sphi 0, %s108
      %s111 = sphi 0, %s110
      %s125 = sphi 0, %s111
      %s129 = sphi 0, %s129
      %s131 = sphi 0, %s129
      %s132 = sphi 0, %s131
      %s146 = sphi 0, %s132
      %s150 = sphi 0, %s150
      %s152 = sphi 0, %s150
      %s153 = sphi 0, %s152
      %s167 = sphi 0, %s153
      %s171 = sphi 0, %s171
      %s173 = sphi 0, %s171
      %s174 = sphi 0, %s173
      %s188 = sphi 0, %s174
      %s194 = sphi 0, %s196
      %s197 = sphi 0, %s194
      %s198 = sphi 0, %s197
      %s214 = sphi 0, %s198
    $region4: #{tpu_custom_call.1} parent=1 // loop_header_branch
      %21 = sbr.rel (%p19) target = $region8
    $region5: #{tpu_custom_call.1} parent=1 // loop_body
      %s23 = ssub.s32 %s18, 1
      %s24 = ssub.s32 %s18, 2
      %s31 = sadd.s32 1, %s26
      %p32 = scmp.ge.s32.totalorder %s31, 1
      %s33 = scalar_select %p32, 0, %s31
      %s34 = sadd.s32 1, %s25
      %s35 = scalar_select %p32, %s34, %s25
      %p36 = scmp.ge.s32.totalorder %s35, 2
      %s37 = scalar_select %p36, 0, %s35
      %s38 = ssub.s32 %s25, %s37
      %s39 = ssub.s32 %s26, %s33
      %s40 = sor.u32 %s38, %s39
      %p41 = scmp.eq.s32.totalorder %s40, 0
      %s43 = sadd.s32 %s42, 1
      %s44 = scalar_select %p41, %s42, %s43
      %p47 = pneg %p41
      %p48 = scmp.eq.s32.totalorder %s18, 1
      %p49 = por %p47, %p48
      %p50 = scmp.ne.s32.totalorder %s42, %s45
      %p51 = scmp.eq.s32.totalorder %s18, 0
      %p52 = por %p50, %p51
      %p53 = scmp.ne.s32.totalorder %s42, %s45
      %p54 = scmp.eq.s32.totalorder %s23, 1
      %p55 = por %p53, %p54
      %p56 = scmp.ne.s32.totalorder %s45, %s46
      %p57 = scmp.eq.s32.totalorder %s23, 0
      %p58 = por %p56, %p57
      %p59 = scmp.ne.s32.totalorder %s45, %s46
      %p60 = scmp.eq.s32.totalorder %s24, 1
      %p61 = por %p59, %p60
      %p63 = scmp.ne.s32.totalorder %s46, %s62
      %p64 = scmp.eq.s32.totalorder %s24, 0
      %p65 = por %p63, %p64
      %s67 = sadd.s32 %s66, 1
      %p70 = scmp.eq.s32.totalorder %s18, 1
      %p71 = scmp.ne.s32.totalorder %s66, %s68
      %p72 = scmp.eq.s32.totalorder %s18, 0
      %p73 = por %p71, %p72
      %p74 = scmp.ne.s32.totalorder %s66, %s68
      %p75 = scmp.eq.s32.totalorder %s23, 1
      %p76 = por %p74, %p75
      %p77 = scmp.ne.s32.totalorder %s68, %s69
      %p78 = scmp.eq.s32.totalorder %s23, 0
      %p79 = por %p77, %p78
      %p80 = scmp.ne.s32.totalorder %s68, %s69
      %p81 = scmp.eq.s32.totalorder %s24, 1
      %p82 = por %p80, %p81
      %p84 = scmp.ne.s32.totalorder %s69, %s83
      %p85 = scmp.eq.s32.totalorder %s24, 0
      %p86 = por %p84, %p85
      %s88 = sadd.s32 %s87, 1
      %p91 = scmp.eq.s32.totalorder %s18, 1
      %p92 = scmp.ne.s32.totalorder %s87, %s89
      %p93 = scmp.eq.s32.totalorder %s18, 0
      %p94 = por %p92, %p93
      %p95 = scmp.ne.s32.totalorder %s87, %s89
      %p96 = scmp.eq.s32.totalorder %s23, 1
      %p97 = por %p95, %p96
      %p98 = scmp.ne.s32.totalorder %s89, %s90
      %p99 = scmp.eq.s32.totalorder %s23, 0
      %p100 = por %p98, %p99
      %p101 = scmp.ne.s32.totalorder %s89, %s90
      %p102 = scmp.eq.s32.totalorder %s24, 1
      %p103 = por %p101, %p102
      %p105 = scmp.ne.s32.totalorder %s90, %s104
      %p106 = scmp.eq.s32.totalorder %s24, 0
      %p107 = por %p105, %p106
      %s109 = sadd.s32 %s108, 1
      %p112 = scmp.eq.s32.totalorder %s18, 1
      %p113 = scmp.ne.s32.totalorder %s108, %s110
      %p114 = scmp.eq.s32.totalorder %s18, 0
      %p115 = por %p113, %p114
      %p116 = scmp.ne.s32.totalorder %s108, %s110
      %p117 = scmp.eq.s32.totalorder %s23, 1
      %p118 = por %p116, %p117
      %p119 = scmp.ne.s32.totalorder %s110, %s111
      %p120 = scmp.eq.s32.totalorder %s23, 0
      %p121 = por %p119, %p120
      %p122 = scmp.ne.s32.totalorder %s110, %s111
      %p123 = scmp.eq.s32.totalorder %s24, 1
      %p124 = por %p122, %p123
      %p126 = scmp.ne.s32.totalorder %s111, %s125
      %p127 = scmp.eq.s32.totalorder %s24, 0
      %p128 = por %p126, %p127
      %s130 = sadd.s32 %s129, 1
      %p133 = scmp.eq.s32.totalorder %s18, 1
      %p134 = scmp.ne.s32.totalorder %s129, %s131
      %p135 = scmp.eq.s32.totalorder %s18, 0
      %p136 = por %p134, %p135
      %p137 = scmp.ne.s32.totalorder %s129, %s131
      %p138 = scmp.eq.s32.totalorder %s23, 1
      %p139 = por %p137, %p138
      %p140 = scmp.ne.s32.totalorder %s131, %s132
      %p141 = scmp.eq.s32.totalorder %s23, 0
      %p142 = por %p140, %p141
      %p143 = scmp.ne.s32.totalorder %s131, %s132
      %p144 = scmp.eq.s32.totalorder %s24, 1
      %p145 = por %p143, %p144
      %p147 = scmp.ne.s32.totalorder %s132, %s146
      %p148 = scmp.eq.s32.totalorder %s24, 0
      %p149 = por %p147, %p148
      %s151 = sadd.s32 %s150, 1
      %p154 = scmp.eq.s32.totalorder %s18, 1
      %p155 = scmp.ne.s32.totalorder %s150, %s152
      %p156 = scmp.eq.s32.totalorder %s18, 0
      %p157 = por %p155, %p156
      %p158 = scmp.ne.s32.totalorder %s150, %s152
      %p159 = scmp.eq.s32.totalorder %s23, 1
      %p160 = por %p158, %p159
      %p161 = scmp.ne.s32.totalorder %s152, %s153
      %p162 = scmp.eq.s32.totalorder %s23, 0
      %p163 = por %p161, %p162
      %p164 = scmp.ne.s32.totalorder %s152, %s153
      %p165 = scmp.eq.s32.totalorder %s24, 1
      %p166 = por %p164, %p165
      %p168 = scmp.ne.s32.totalorder %s153, %s167
      %p169 = scmp.eq.s32.totalorder %s24, 0
      %p170 = por %p168, %p169
      %s172 = sadd.s32 %s171, 1
      %p175 = scmp.eq.s32.totalorder %s18, 1
      %p176 = scmp.ne.s32.totalorder %s171, %s173
      %p177 = scmp.eq.s32.totalorder %s18, 0
      %p178 = por %p176, %p177
      %p179 = scmp.ne.s32.totalorder %s171, %s173
      %p180 = scmp.eq.s32.totalorder %s23, 1
      %p181 = por %p179, %p180
      %p182 = scmp.ne.s32.totalorder %s173, %s174
      %p183 = scmp.eq.s32.totalorder %s23, 0
      %p184 = por %p182, %p183
      %p185 = scmp.ne.s32.totalorder %s173, %s174
      %p186 = scmp.eq.s32.totalorder %s24, 1
      %p187 = por %p185, %p186
      %p189 = scmp.ne.s32.totalorder %s174, %s188
      %p190 = scmp.eq.s32.totalorder %s24, 0
      %p191 = por %p189, %p190
      %s192 = ssub.s32 %s25, %s37
      %p193 = scmp.eq.s32.totalorder %s192, 0
      %s195 = sadd.s32 %s194, 1
      %s196 = scalar_select %p193, %s194, %s195
      %p199 = pneg %p193
      %p200 = scmp.eq.s32.totalorder %s18, 1
      %p201 = por %p199, %p200
      %p202 = scmp.ne.s32.totalorder %s194, %s197
      %p203 = scmp.eq.s32.totalorder %s18, 0
      %p204 = por %p202, %p203
      %p205 = scmp.ne.s32.totalorder %s194, %s197
      %p206 = scmp.eq.s32.totalorder %s23, 1
      %p207 = por %p205, %p206
      %p208 = scmp.ne.s32.totalorder %s197, %s198
      %p209 = scmp.eq.s32.totalorder %s23, 0
      %p210 = por %p208, %p209
      %p211 = scmp.ne.s32.totalorder %s197, %s198
      %p212 = scmp.eq.s32.totalorder %s24, 1
      %p213 = por %p211, %p212
      %p215 = scmp.ne.s32.totalorder %s198, %s214
      %p216 = scmp.eq.s32.totalorder %s24, 0
      %p217 = por %p215, %p216
      %p218 = scmp.le.s32.totalorder 1, %s18
      %p219 = scmp.lt.s32.totalorder %s18, 3
      %p220 = pnand %p218, %p219
      %p221 = pneg %p220
      // Predicated region
      $region9: #{tpu_custom_call.1} parent=5 // pred_check
        _
      $region10: #{tpu_custom_call.1} parent=5 // pred_check_branch
        %223 = sbr.rel (%p220) target = $region12
      $region11: #{tpu_custom_call.1} parent=5 // pred_region
        %s224 = ssub.s32 %s18, 1
        // Predicated region
        $region13: #{tpu_custom_call.1} parent=11 // pred_check
          %p225 = pneg %p79
        $region14: #{tpu_custom_call.1} parent=11 // pred_check_branch
          %227 = sbr.rel (%p225) target = $region16
        $region15: #{tpu_custom_call.1} parent=11 // pred_region
          _
        $region16: #{tpu_custom_call.1} parent=11 // pred_fallthru
          _
        // Predicated region
        $region17: #{tpu_custom_call.1} parent=11 // pred_check
          %p228 = pneg %p100
        $region18: #{tpu_custom_call.1} parent=11 // pred_check_branch
          %230 = sbr.rel (%p228) target = $region20
        $region19: #{tpu_custom_call.1} parent=11 // pred_region
          _
        $region20: #{tpu_custom_call.1} parent=11 // pred_fallthru
          _
        // Predicated region
        $region21: #{tpu_custom_call.1} parent=11 // pred_check
          %p231 = pneg %p121
        $region22: #{tpu_custom_call.1} parent=11 // pred_check_branch
          %233 = sbr.rel (%p231) target = $region24
        $region23: #{tpu_custom_call.1} parent=11 // pred_region
          %s235 = ssub.s32 2048, 2048
          %236 = vsyncadd [#allocation4], %s235
          %s237 = sshll.u32 [#allocation3], 4
          %s238 = int_to_ptr.vmem [resolvable:$true] %s237
          %243 = dma.hbm_to_vmem [thread:$0]  %s3, 2048, %s238, [#allocation4], 64, 64, 4
        $region24: #{tpu_custom_call.1} parent=11 // pred_fallthru
          _
        // Predicated region
        $region25: #{tpu_custom_call.1} parent=11 // pred_check
          %p244 = pneg %p142
        $region26: #{tpu_custom_call.1} parent=11 // pred_check_branch
          %246 = sbr.rel (%p244) target = $region28
        $region27: #{tpu_custom_call.1} parent=11 // pred_region
          _
        $region28: #{tpu_custom_call.1} parent=11 // pred_fallthru
          _
        // Predicated region
        $region29: #{tpu_custom_call.1} parent=11 // pred_check
          %p247 = pneg %p163
        $region30: #{tpu_custom_call.1} parent=11 // pred_check_branch
          %249 = sbr.rel (%p247) target = $region32
        $region31: #{tpu_custom_call.1} parent=11 // pred_region
          %s251 = ssub.s32 2048, 2048
          %252 = vsyncadd [#allocation7], %s251
          %s253 = sshll.u32 [#allocation6], 4
          %s254 = int_to_ptr.vmem [resolvable:$true] %s253
          %259 = dma.hbm_to_vmem [thread:$0]  %s5, 2048, %s254, [#allocation7], 128, 128, 8
        $region32: #{tpu_custom_call.1} parent=11 // pred_fallthru
          _
        // Predicated region
        $region33: #{tpu_custom_call.1} parent=11 // pred_check
          %p260 = pneg %p184
        $region34: #{tpu_custom_call.1} parent=11 // pred_check_branch
          %262 = sbr.rel (%p260) target = $region36
        $region35: #{tpu_custom_call.1} parent=11 // pred_region
          _
        $region36: #{tpu_custom_call.1} parent=11 // pred_fallthru
          _
      $region12: #{tpu_custom_call.1} parent=5 // pred_fallthru
        _
      %p263 = scmp.lt.s32.totalorder %s18, 2
      // Predicated region
      $region37: #{tpu_custom_call.1} parent=5 // pred_check
        %p264 = pneg %p263
      $region38: #{tpu_custom_call.1} parent=5 // pred_check_branch
        %266 = sbr.rel (%p264) target = $region40
      $region39: #{tpu_custom_call.1} parent=5 // pred_region
        // Predicated region
        $region41: #{tpu_custom_call.1} parent=39 // pred_check
          %p267 = pneg %p52
        $region42: #{tpu_custom_call.1} parent=39 // pred_check_branch
          %269 = sbr.rel (%p267) target = $region44
        $region43: #{tpu_custom_call.1} parent=39 // pred_region
          %s270 = smul.u32 2, %s26
          %p271 = scmp.lt.s32.totalorder %s25, 1
          %s272 = scalar_select %p271, %s25, 1
          %p273 = scmp.lt.s32.totalorder %s270, 1
          %s274 = scalar_select %p273, %s270, 1
          %s275 = smul.addr %s272, 2
          %s276 = sadd.s32 %s274, %s275
          %s277 = smul.addr %s276, 4
          %s278 = scalar_lea.vmem %s0, %s277
          %s279 = smul.u32 2, %s26
        $region44: #{tpu_custom_call.1} parent=39 // pred_fallthru
          _
      $region40: #{tpu_custom_call.1} parent=5 // pred_fallthru
        _
      %p280 = scmp.le.s32.totalorder 1, %s18
      %p281 = scmp.lt.s32.totalorder %s18, 3
      %p282 = pnand %p280, %p281
      %p283 = pneg %p282
      // Predicated region
      $region45: #{tpu_custom_call.1} parent=5 // pred_check
        _
      $region46: #{tpu_custom_call.1} parent=5 // pred_check_branch
        %285 = sbr.rel (%p282) target = $region48
      $region47: #{tpu_custom_call.1} parent=5 // pred_region
        %s286 = ssub.s32 %s18, 1
        // Predicated region
        $region49: #{tpu_custom_call.1} parent=47 // pred_check
          %p287 = pneg %p121
        $region50: #{tpu_custom_call.1} parent=47 // pred_check_branch
          %289 = sbr.rel (%p287) target = $region52
        $region51: #{tpu_custom_call.1} parent=47 // pred_region
          %290 = dma.done [#allocation4], 2048
        $region52: #{tpu_custom_call.1} parent=47 // pred_fallthru
          _
        // Predicated region
        $region53: #{tpu_custom_call.1} parent=47 // pred_check
          %p291 = pneg %p163
        $region54: #{tpu_custom_call.1} parent=47 // pred_check_branch
          %293 = sbr.rel (%p291) target = $region56
        $region55: #{tpu_custom_call.1} parent=47 // pred_region
          %294 = dma.done [#allocation7], 2048
        $region56: #{tpu_custom_call.1} parent=47 // pred_fallthru
          _
        %s295 = smul.u32 2, %s28
        %p296 = scmp.lt.s32.totalorder %s27, 1
        %s297 = scalar_select %p296, %s27, 1
        %p298 = scmp.lt.s32.totalorder %s295, 1
        %s299 = scalar_select %p298, %s295, 1
        %s300 = smul.addr %s297, 2
        %s301 = sadd.s32 %s299, %s300
        %s302 = smul.addr %s301, 4
        %s303 = scalar_lea.vmem %s0, %s302
        %p304 = pneg %p58
        %p305 = pneg %p55
        %p306 = pneg %p79
        %p307 = pneg %p76
        %p308 = pneg %p100
        %p309 = pneg %p97
        %p310 = pneg %p121
        %p311 = pneg %p118
        %p312 = pneg %p142
        %p313 = pneg %p139
        %p314 = pneg %p163
        %p315 = pneg %p160
        %p316 = pneg %p184
        %p317 = pneg %p181
        %p318 = pneg %p210
        %p319 = pneg %p207
        %s320 = sand.u32 %s197, 1
        %s321 = scalar_lea.sflag [#allocation5], %s320
        %s322 = sand.u32 %s197, 1
        %s323 = scalar_lea.vmem [#allocation8], %s322
        %s324 = smul.u32 2, %s28
        %p325 = scmp.lt.s32.totalorder %s27, 1
        %s326 = scalar_select %p325, %s27, 1
        %p327 = scmp.lt.s32.totalorder %s324, 1
        %s328 = scalar_select %p327, %s324, 1
        %s329 = smul.addr %s326, 2
        %s330 = sadd.s32 %s328, %s329
        %s331 = smul.addr %s330, 4
        %s332 = scalar_lea.vmem %s0, %s331
        %s333 = smul.u32 2, %s28
        %p335 = scmp.eq.s32.totalorder %s28, 0
        // Predicated region
        $region57: #{tpu_custom_call.1} parent=47 // pred_check
          %p336 = pneg %p335
        $region58: #{tpu_custom_call.1} parent=47 // pred_check_branch
          %338 = sbr.rel (%p336) target = $region60
        $region59: #{tpu_custom_call.1} parent=47 // pred_region
          %339 = vst [vmem:[#allocation2] sm:$0xff] 0.0
        $region60: #{tpu_custom_call.1} parent=47 // pred_fallthru
          _
        %v340 = vld [vmem:[%s332] sm:$0xf]
        %v341 = vld [vmem:[%s332 + $0x4] sm:$0xf]
        %v342 = vld [vmem:[%s1] sm:$0x3]
        %v343 = vld [vmem:[%s2] sm:$0x1]
        %v345 = vlaneseq
        %v346 = vshrl.u32 %v345, 7
        %v347 = vsub.s32 0, %v346
        %v348 = vrot.slane %v343, %v347
        %v352 = vunpack.c.l.b16 %v340
        %v353 = vunpack.c.l.b16 %v341
        %v354 = vpack.c.b16 %v353, %v352
        %vm355 = vcmask 31744
        %v357 = vsel %vm355, %v354, 0
        %vm359 = vcmask 1041408
        %v361 = vsel %vm359, %v342, 0
        %363 = vmatprep.subr.bf16.mxu0 0
        %364 = vmatpush1.bf16.msra.mxu0 %v361
        %365 = vmatprep.subr.bf16.mxu0 0
        %366 = vmatpush1.bf16.msra.mxu0 0
        %367 = vmatprep.subr.bf16.mxu0 0
        %368 = vmatpush1.bf16.msra.mxu0 0
        %369 = vmatprep.subr.bf16.mxu0 0
        %370 = vmatpush1.bf16.msra.mxu0 0
        %371 = vmatprep.subr.bf16.mxu0 0
        %372 = vmatpush1.bf16.msra.mxu0 0
        %373 = vmatprep.subr.bf16.mxu0 0
        %374 = vmatpush1.bf16.msra.mxu0 0
        %375 = vmatprep.subr.bf16.mxu0 0
        %376 = vmatpush1.bf16.msra.mxu0 0
        %377 = vmatprep.subr.bf16.mxu0 0
        %378 = vmatpush1.bf16.msra.mxu0 0
        %379 = vmatprep.subr.bf16.mxu0 0
        %380 = vmatpush1.bf16.msra.mxu0 0
        %381 = vmatprep.subr.bf16.mxu0 0
        %382 = vmatpush1.bf16.msra.mxu0 0
        %383 = vmatprep.subr.bf16.mxu0 0
        %384 = vmatpush1.bf16.msra.mxu0 0
        %385 = vmatprep.subr.bf16.mxu0 0
        %386 = vmatpush1.bf16.msra.mxu0 0
        %387 = vmatprep.subr.bf16.mxu0 0
        %388 = vmatpush1.bf16.msra.mxu0 0
        %389 = vmatprep.subr.bf16.mxu0 0
        %390 = vmatpush1.bf16.msra.mxu0 0
        %391 = vmatprep.subr.bf16.mxu0 0
        %392 = vmatpush1.bf16.msra.mxu0 0
        %393 = vmatprep.subr.bf16.mxu0 0
        %394 = vmatpush1.bf16.msra.mxu0 0
        %395 = vmatprep.mubr.bf16.mxu0 0
        %396 = vmatmul.mubr.bf16.gmra.mrb[0].mxu0 %v357
        %v397 = vpop.f32.mrb[0].mxu0
        %v398 = vadd.f32 %v348, %v397
        %v399 = vpop.f32.mrb[0].mxu0
        %v400 = vpop.f32.mrb[0].mxu0
        %v401 = vadd.f32 %v348, %v400
        %v402 = vpop.f32.mrb[0].mxu0
        %403 = vdwg.mxu0
        %v404 = vmul.f32 %v398, %v398
        %v405 = vmul.f32 %v401, %v401
        %v406 = vmul.f32 %v398, %v404
        %v407 = vmul.f32 %v401, %v405
        %v408 = vmul.f32 %v406, 0.044715
        %v409 = vmul.f32 %v407, 0.044715
        %v410 = vadd.f32 %v398, %v408
        %v411 = vadd.f32 %v401, %v409
        %v412 = vmul.f32 %v410, 0.7978846
        %v413 = vmul.f32 %v411, 0.7978846
        %v414 = vtanh.pop %v412
        %v415 = vtanh.pop %v413
        %v416 = vadd.f32 %v414, 1.0
        %v417 = vadd.f32 %v415, 1.0
        %v418 = vmul.f32 %v416, 0.5
        %v419 = vmul.f32 %v417, 0.5
        %v420 = vmul.f32 %v398, %v418
        %v421 = vmul.f32 %v401, %v419
        %v422 = vpack.c.bf16 %v421, %v420
        %v423 = vld [vmem:[#allocation3] sm:$0xf]
        %v424 = vld [vmem:[#allocation3 + $0x4] sm:$0xf]
        %v425 = vld [vmem:[#allocation3 + $0x8] sm:$0xf]
        %v426 = vld [vmem:[#allocation3 + $0xc] sm:$0xf]
        %v427 = vld [vmem:[#allocation3 + $0x10] sm:$0xf]
        %v428 = vld [vmem:[#allocation3 + $0x14] sm:$0xf]
        %v429 = vld [vmem:[#allocation3 + $0x18] sm:$0xf]
        %v430 = vld [vmem:[#allocation3 + $0x1c] sm:$0xf]
        %v431 = vld [vmem:[#allocation3 + $0x20] sm:$0xf]
        %v432 = vld [vmem:[#allocation3 + $0x24] sm:$0xf]
        %v433 = vld [vmem:[#allocation3 + $0x28] sm:$0xf]
        %v434 = vld [vmem:[#allocation3 + $0x2c] sm:$0xf]
        %v435 = vld [vmem:[#allocation3 + $0x30] sm:$0xf]
        %v436 = vld [vmem:[#allocation3 + $0x34] sm:$0xf]
        %v437 = vld [vmem:[#allocation3 + $0x38] sm:$0xf]
        %v438 = vld [vmem:[#allocation3 + $0x3c] sm:$0xf]
        %v439 = vld [vmem:[%s4] sm:$0x1]
        %v441 = vlaneseq
        %v442 = vshrl.u32 %v441, 7
        %v443 = vsub.s32 0, %v442
        %v444 = vrot.slane %v439, %v443
        %v462 = vunpack.c.l.b16 %v423
        %v463 = vunpack.c.l.b16 %v424
        %v464 = vunpack.c.l.b16 %v425
        %v465 = vunpack.c.l.b16 %v426
        %v466 = vunpack.c.l.b16 %v427
        %v467 = vunpack.c.l.b16 %v428
        %v468 = vunpack.c.l.b16 %v429
        %v469 = vunpack.c.l.b16 %v430
        %v470 = vunpack.c.l.b16 %v431
        %v471 = vunpack.c.l.b16 %v432
        %v472 = vunpack.c.l.b16 %v433
        %v473 = vunpack.c.l.b16 %v434
        %v474 = vunpack.c.l.b16 %v435
        %v475 = vunpack.c.l.b16 %v436
        %v476 = vunpack.c.l.b16 %v437
        %v477 = vunpack.c.l.b16 %v438
        %v478 = vpack.c.b16 %v463, %v462
        %v479 = vpack.c.b16 %v465, %v464
        %v480 = vpack.c.b16 %v467, %v466
        %v481 = vpack.c.b16 %v469, %v468
        %v482 = vpack.c.b16 %v471, %v470
        %v483 = vpack.c.b16 %v473, %v472
        %v484 = vpack.c.b16 %v475, %v474
        %v485 = vpack.c.b16 %v477, %v476
        %494 = vmatprep.subr.bf16.mxu0 0
        %495 = vmatpush1.bf16.msra.mxu0 %v478
        %496 = vmatprep.subr.bf16.mxu0 0
        %497 = vmatpush1.bf16.msra.mxu0 %v479
        %498 = vmatprep.subr.bf16.mxu0 0
        %499 = vmatpush1.bf16.msra.mxu0 %v480
        %500 = vmatprep.subr.bf16.mxu0 0
        %501 = vmatpush1.bf16.msra.mxu0 %v481
        %502 = vmatprep.subr.bf16.mxu0 0
        %503 = vmatpush1.bf16.msra.mxu0 %v482
        %504 = vmatprep.subr.bf16.mxu0 0
        %505 = vmatpush1.bf16.msra.mxu0 %v483
        %506 = vmatprep.subr.bf16.mxu0 0
        %507 = vmatpush1.bf16.msra.mxu0 %v484
        %508 = vmatprep.subr.bf16.mxu0 0
        %509 = vmatpush1.bf16.msra.mxu0 %v485
        %510 = vmatprep.subr.bf16.mxu0 0
        %511 = vmatpush1.bf16.msra.mxu0 0
        %512 = vmatprep.subr.bf16.mxu0 0
        %513 = vmatpush1.bf16.msra.mxu0 0
        %514 = vmatprep.subr.bf16.mxu0 0
        %515 = vmatpush1.bf16.msra.mxu0 0
        %516 = vmatprep.subr.bf16.mxu0 0
        %517 = vmatpush1.bf16.msra.mxu0 0
        %518 = vmatprep.subr.bf16.mxu0 0
        %519 = vmatpush1.bf16.msra.mxu0 0
        %520 = vmatprep.subr.bf16.mxu0 0
        %521 = vmatpush1.bf16.msra.mxu0 0
        %522 = vmatprep.subr.bf16.mxu0 0
        %523 = vmatpush1.bf16.msra.mxu0 0
        %524 = vmatprep.subr.bf16.mxu0 0
        %525 = vmatpush1.bf16.msra.mxu0 0
        %526 = vmatprep.mubr.bf16.mxu0 0
        %527 = vmatmul.mubr.bf16.gmra.mrb[0].mxu0 %v422
        %v528 = vpop.f32.mrb[0].mxu0
        %v529 = vadd.f32 %v444, %v528
        %v530 = vpop.f32.mrb[0].mxu0
        %v531 = vpop.f32.mrb[0].mxu0
        %v532 = vadd.f32 %v444, %v531
        %v533 = vpop.f32.mrb[0].mxu0
        %534 = vdwg.mxu0
        %v535 = vmul.f32 %v529, %v529
        %v536 = vmul.f32 %v532, %v532
        %v537 = vmul.f32 %v529, %v535
        %v538 = vmul.f32 %v532, %v536
        %v539 = vmul.f32 %v537, 0.044715
        %v540 = vmul.f32 %v538, 0.044715
        %v541 = vadd.f32 %v529, %v539
        %v542 = vadd.f32 %v532, %v540
        %v543 = vmul.f32 %v541, 0.7978846
        %v544 = vmul.f32 %v542, 0.7978846
        %v545 = vtanh.pop %v543
        %v546 = vtanh.pop %v544
        %v547 = vadd.f32 %v545, 1.0
        %v548 = vadd.f32 %v546, 1.0
        %v549 = vmul.f32 %v547, 0.5
        %v550 = vmul.f32 %v548, 0.5
        %v551 = vmul.f32 %v529, %v549
        %v552 = vmul.f32 %v532, %v550
        %v553 = vpack.c.bf16 %v552, %v551
        %s554 = scalar_lea.vmem [#allocation3], 64
        %v555 = vld [vmem:[%s554] sm:$0xf]
        %v556 = vld [vmem:[%s554 + $0x4] sm:$0xf]
        %v557 = vld [vmem:[%s554 + $0x8] sm:$0xf]
        %v558 = vld [vmem:[%s554 + $0xc] sm:$0xf]
        %v559 = vld [vmem:[%s554 + $0x10] sm:$0xf]
        %v560 = vld [vmem:[%s554 + $0x14] sm:$0xf]
        %v561 = vld [vmem:[%s554 + $0x18] sm:$0xf]
        %v562 = vld [vmem:[%s554 + $0x1c] sm:$0xf]
        %v563 = vld [vmem:[%s554 + $0x20] sm:$0xf]
        %v564 = vld [vmem:[%s554 + $0x24] sm:$0xf]
        %v565 = vld [vmem:[%s554 + $0x28] sm:$0xf]
        %v566 = vld [vmem:[%s554 + $0x2c] sm:$0xf]
        %v567 = vld [vmem:[%s554 + $0x30] sm:$0xf]
        %v568 = vld [vmem:[%s554 + $0x34] sm:$0xf]
        %v569 = vld [vmem:[%s554 + $0x38] sm:$0xf]
        %v570 = vld [vmem:[%s554 + $0x3c] sm:$0xf]
        %s571 = scalar_lea.vmem %s4, 1
        %v572 = vld [vmem:[%s571] sm:$0x1]
        %v574 = vlaneseq
        %v575 = vshrl.u32 %v574, 7
        %v576 = vsub.s32 0, %v575
        %v577 = vrot.slane %v572, %v576
        %v595 = vunpack.c.l.b16 %v555
        %v596 = vunpack.c.l.b16 %v556
        %v597 = vunpack.c.l.b16 %v557
        %v598 = vunpack.c.l.b16 %v558
        %v599 = vunpack.c.l.b16 %v559
        %v600 = vunpack.c.l.b16 %v560
        %v601 = vunpack.c.l.b16 %v561
        %v602 = vunpack.c.l.b16 %v562
        %v603 = vunpack.c.l.b16 %v563
        %v604 = vunpack.c.l.b16 %v564
        %v605 = vunpack.c.l.b16 %v565
        %v606 = vunpack.c.l.b16 %v566
        %v607 = vunpack.c.l.b16 %v567
        %v608 = vunpack.c.l.b16 %v568
        %v609 = vunpack.c.l.b16 %v569
        %v610 = vunpack.c.l.b16 %v570
        %v611 = vpack.c.b16 %v596, %v595
        %v612 = vpack.c.b16 %v598, %v597
        %v613 = vpack.c.b16 %v600, %v599
        %v614 = vpack.c.b16 %v602, %v601
        %v615 = vpack.c.b16 %v604, %v603
        %v616 = vpack.c.b16 %v606, %v605
        %v617 = vpack.c.b16 %v608, %v607
        %v618 = vpack.c.b16 %v610, %v609
        %627 = vmatprep.subr.bf16.mxu0 0
        %628 = vmatpush1.bf16.msra.mxu0 %v611
        %629 = vmatprep.subr.bf16.mxu0 0
        %630 = vmatpush1.bf16.msra.mxu0 %v612
        %631 = vmatprep.subr.bf16.mxu0 0
        %632 = vmatpush1.bf16.msra.mxu0 %v613
        %633 = vmatprep.subr.bf16.mxu0 0
        %634 = vmatpush1.bf16.msra.mxu0 %v614
        %635 = vmatprep.subr.bf16.mxu0 0
        %636 = vmatpush1.bf16.msra.mxu0 %v615
        %637 = vmatprep.subr.bf16.mxu0 0
        %638 = vmatpush1.bf16.msra.mxu0 %v616
        %639 = vmatprep.subr.bf16.mxu0 0
        %640 = vmatpush1.bf16.msra.mxu0 %v617
        %641 = vmatprep.subr.bf16.mxu0 0
        %642 = vmatpush1.bf16.msra.mxu0 %v618
        %643 = vmatprep.subr.bf16.mxu0 0
        %644 = vmatpush1.bf16.msra.mxu0 0
        %645 = vmatprep.subr.bf16.mxu0 0
        %646 = vmatpush1.bf16.msra.mxu0 0
        %647 = vmatprep.subr.bf16.mxu0 0
        %648 = vmatpush1.bf16.msra.mxu0 0
        %649 = vmatprep.subr.bf16.mxu0 0
        %650 = vmatpush1.bf16.msra.mxu0 0
        %651 = vmatprep.subr.bf16.mxu0 0
        %652 = vmatpush1.bf16.msra.mxu0 0
        %653 = vmatprep.subr.bf16.mxu0 0
        %654 = vmatpush1.bf16.msra.mxu0 0
        %655 = vmatprep.subr.bf16.mxu0 0
        %656 = vmatpush1.bf16.msra.mxu0 0
        %657 = vmatprep.subr.bf16.mxu0 0
        %658 = vmatpush1.bf16.msra.mxu0 0
        %659 = vmatprep.mubr.bf16.mxu0 0
        %660 = vmatmul.mubr.bf16.gmra.mrb[0].mxu0 %v553
        %v661 = vpop.f32.mrb[0].mxu0
        %v662 = vadd.f32 %v577, %v661
        %v663 = vpop.f32.mrb[0].mxu0
        %v664 = vpop.f32.mrb[0].mxu0
        %v665 = vadd.f32 %v577, %v664
        %v666 = vpop.f32.mrb[0].mxu0
        %667 = vdwg.mxu0
        %v668 = vmul.f32 %v662, %v662
        %v669 = vmul.f32 %v665, %v665
        %v670 = vmul.f32 %v662, %v668
        %v671 = vmul.f32 %v665, %v669
        %v672 = vmul.f32 %v670, 0.044715
        %v673 = vmul.f32 %v671, 0.044715
        %v674 = vadd.f32 %v662, %v672
        %v675 = vadd.f32 %v665, %v673
        %v676 = vmul.f32 %v674, 0.7978846
        %v677 = vmul.f32 %v675, 0.7978846
        %v678 = vtanh.pop %v676
        %v679 = vtanh.pop %v677
        %v680 = vadd.f32 %v678, 1.0
        %v681 = vadd.f32 %v679, 1.0
        %v682 = vmul.f32 %v680, 0.5
        %v683 = vmul.f32 %v681, 0.5
        %v684 = vmul.f32 %v662, %v682
        %v685 = vmul.f32 %v665, %v683
        // Predicated region
        $region61: #{tpu_custom_call.1} parent=47 // pred_check
          %p686 = pneg %p335
        $region62: #{tpu_custom_call.1} parent=47 // pred_check_branch
          %688 = sbr.rel (%p686) target = $region64
        $region63: #{tpu_custom_call.1} parent=47 // pred_region
          %s689 = smul.u32 %s28, 16
          %v690 = vlaneseq
          %v691 = vshrl.u32 %v690, 7
          %v692 = vadd.s32 %v691, 8
          %v693 = vstv %s689
          %v694 = vadd.s32 %v693, %v691
          %v695 = vadd.s32 %v693, %v692
          %vm696 = vcmp.lt.s32.totalorder %v694, 4
          %vm697 = vcmp.lt.s32.totalorder %v695, 4
          %v698 = vsel %vm696, 1, 0
          %v699 = vsel %vm697, 1, 0
          %vm700 = vcmp.eq.s32.totalorder %v698, 1
          %vm701 = vcmp.eq.s32.totalorder %v699, 1
          %v702 = vsel %vm700, %v684, 0.0
          %v703 = vsel %vm701, %v685, 0.0
          %v704 = vld [vmem:[#allocation2] sm:$0xff]
          %v705 = vadd.f32 %v702, %v703
          %v706 = vadd.f32 %v704, %v705
          %707 = vst [vmem:[#allocation2] sm:$0xff] %v706
        $region64: #{tpu_custom_call.1} parent=47 // pred_fallthru
          _
        %p708 = scmp.ne.s32.totalorder %s28, 0
        // Predicated region
        $region65: #{tpu_custom_call.1} parent=47 // pred_check
          %p709 = pneg %p708
        $region66: #{tpu_custom_call.1} parent=47 // pred_check_branch
          %711 = sbr.rel (%p709) target = $region68
        $region67: #{tpu_custom_call.1} parent=47 // pred_region
          %v712 = vld [vmem:[#allocation2] sm:$0xff]
          %v713 = vadd.f32 %v684, %v685
          %v714 = vadd.f32 %v712, %v713
          %715 = vst [vmem:[#allocation2] sm:$0xff] %v714
        $region68: #{tpu_custom_call.1} parent=47 // pred_fallthru
          _
        // Predicated region
        $region69: #{tpu_custom_call.1} parent=47 // pred_check
          %p716 = pneg %p335
        $region70: #{tpu_custom_call.1} parent=47 // pred_check_branch
          %718 = sbr.rel (%p716) target = $region72
        $region71: #{tpu_custom_call.1} parent=47 // pred_region
          %v719 = vld [vmem:[#allocation2] sm:$0xff]
          %v720 = vrot.slane %v719, 4
          %v721 = vadd.f32 %v719, %v720
          %v722 = vrot.slane %v721, 2
          %v723 = vadd.f32 %v721, %v722
          %v724 = vrot.slane %v723, 1
          %v725 = vadd.f32 %v723, %v724
          %v726 = vld [vmem:[#allocation6] sm:$0xff]
          %v727 = vld [vmem:[#allocation6 + $0x8] sm:$0xff]
          %v728 = vld [vmem:[#allocation6 + $0x10] sm:$0xff]
          %v729 = vld [vmem:[#allocation6 + $0x18] sm:$0xff]
          %v730 = vld [vmem:[#allocation6 + $0x20] sm:$0xff]
          %v731 = vld [vmem:[#allocation6 + $0x28] sm:$0xff]
          %v732 = vld [vmem:[#allocation6 + $0x30] sm:$0xff]
          %v733 = vld [vmem:[#allocation6 + $0x38] sm:$0xff]
          %v734 = vld [vmem:[#allocation6 + $0x40] sm:$0xff]
          %v735 = vld [vmem:[#allocation6 + $0x48] sm:$0xff]
          %v736 = vld [vmem:[#allocation6 + $0x50] sm:$0xff]
          %v737 = vld [vmem:[#allocation6 + $0x58] sm:$0xff]
          %v738 = vld [vmem:[#allocation6 + $0x60] sm:$0xff]
          %v739 = vld [vmem:[#allocation6 + $0x68] sm:$0xff]
          %v740 = vld [vmem:[#allocation6 + $0x70] sm:$0xff]
          %v741 = vld [vmem:[#allocation6 + $0x78] sm:$0xff]
          %v742 = vld [vmem:[%s6] sm:$0x1]
          %743 = vmatprep.subr.mxu0 0.0
          %744 = vmatpush1.msra.mxu0 %v726
          %745 = vmatprep.subr.mxu0 0.0
          %746 = vmatpush1.msra.mxu0 %v727
          %747 = vmatprep.subr.mxu0 0.0
          %748 = vmatpush1.msra.mxu0 %v728
          %749 = vmatprep.subr.mxu0 0.0
          %750 = vmatpush1.msra.mxu0 %v729
          %751 = vmatprep.subr.mxu0 0.0
          %752 = vmatpush1.msra.mxu0 %v730
          %753 = vmatprep.subr.mxu0 0.0
          %754 = vmatpush1.msra.mxu0 %v731
          %755 = vmatprep.subr.mxu0 0.0
          %756 = vmatpush1.msra.mxu0 %v732
          %757 = vmatprep.subr.mxu0 0.0
          %758 = vmatpush1.msra.mxu0 %v733
          %759 = vmatprep.subr.mxu0 0.0
          %760 = vmatpush1.msra.mxu0 %v734
          %761 = vmatprep.subr.mxu0 0.0
          %762 = vmatpush1.msra.mxu0 %v735
          %763 = vmatprep.subr.mxu0 0.0
          %764 = vmatpush1.msra.mxu0 %v736
          %765 = vmatprep.subr.mxu0 0.0
          %766 = vmatpush1.msra.mxu0 %v737
          %767 = vmatprep.subr.mxu0 0.0
          %768 = vmatpush1.msra.mxu0 %v738
          %769 = vmatprep.subr.mxu0 0.0
          %770 = vmatpush1.msra.mxu0 %v739
          %771 = vmatprep.subr.mxu0 0.0
          %772 = vmatpush1.msra.mxu0 %v740
          %773 = vmatprep.subr.mxu0 0.0
          %774 = vmatpush1.msra.mxu0 %v741
          %775 = vmatprep.subr.mxu0 0.0
          %776 = vmatpush1.msra.mxu0 0.0
          %777 = vmatprep.subr.mxu0 0.0
          %778 = vmatpush1.msra.mxu0 0.0
          %779 = vmatprep.subr.mxu0 0.0
          %780 = vmatpush1.msra.mxu0 0.0
          %781 = vmatprep.subr.mxu0 0.0
          %782 = vmatpush1.msra.mxu0 0.0
          %783 = vmatprep.subr.mxu0 0.0
          %784 = vmatpush1.msra.mxu0 0.0
          %785 = vmatprep.subr.mxu0 0.0
          %786 = vmatpush1.msra.mxu0 0.0
          %787 = vmatprep.subr.mxu0 0.0
          %788 = vmatpush1.msra.mxu0 0.0
          %789 = vmatprep.subr.mxu0 0.0
          %790 = vmatpush1.msra.mxu0 0.0
          %791 = vmatprep.subr.mxu0 0.0
          %792 = vmatpush1.msra.mxu0 0.0
          %793 = vmatprep.subr.mxu0 0.0
          %794 = vmatpush1.msra.mxu0 0.0
          %795 = vmatprep.subr.mxu0 0.0
          %796 = vmatpush1.msra.mxu0 0.0
          %797 = vmatprep.subr.mxu0 0.0
          %798 = vmatpush1.msra.mxu0 0.0
          %799 = vmatprep.subr.mxu0 0.0
          %800 = vmatpush1.msra.mxu0 0.0
          %801 = vmatprep.subr.mxu0 0.0
          %802 = vmatpush1.msra.mxu0 0.0
          %803 = vmatprep.subr.mxu0 0.0
          %804 = vmatpush1.msra.mxu0 0.0
          %805 = vmatprep.subr.mxu0 0.0
          %806 = vmatpush1.msra.mxu0 0.0
          %807 = vmatprep.mubr.f32.mxu0 0.0
          %808 = vmatmul.mubr.f32.gmra.mrb[0].mxu0 %v725
          %v809 = vpop.f32.mrb[0].mxu0
          %v810 = vadd.f32 %v742, %v809
          %v811 = vpop.f32.mrb[0].mxu0
          %812 = vdwg.mxu0
          %813 = vst [vmem:[%s323] sm:$0x1] %v810
        $region72: #{tpu_custom_call.1} parent=47 // pred_fallthru
          _
        %s814 = sand.u32 %s197, 1
        %s815 = scalar_lea.sflag [#allocation5], %s814
        %s816 = sand.u32 %s197, 1
        %s817 = scalar_lea.vmem [#allocation8], %s816
        // Predicated region
        $region73: #{tpu_custom_call.1} parent=47 // pred_check
          %p818 = pneg %p207
        $region74: #{tpu_custom_call.1} parent=47 // pred_check_branch
          %820 = sbr.rel (%p818) target = $region76
        $region75: #{tpu_custom_call.1} parent=47 // pred_region
          %s822 = ssub.s32 16, 16
          %823 = vsyncadd %s815, %s822
          %s824 = smul.addr %s27, 16
          %s825 = scalar_lea.hbm %s7, %s824
          %s827 = sshll.u32 %s817, 4
          %s828 = int_to_ptr.vmem [resolvable:$true] %s827
          %830 = dma.vmem_to_hbm [thread:$0]  %s828, 16, %s825, %s815
        $region76: #{tpu_custom_call.1} parent=47 // pred_fallthru
          _
      $region48: #{tpu_custom_call.1} parent=5 // pred_fallthru
        _
      %p831 = scmp.le.s32.totalorder 2, %s18
      // Predicated region
      $region77: #{tpu_custom_call.1} parent=5 // pred_check
        %p832 = pneg %p831
      $region78: #{tpu_custom_call.1} parent=5 // pred_check_branch
        %834 = sbr.rel (%p832) target = $region80
      $region79: #{tpu_custom_call.1} parent=5 // pred_region
        %s835 = ssub.s32 %s18, 2
        // Predicated region
        $region81: #{tpu_custom_call.1} parent=79 // pred_check
          %p836 = pneg %p213
        $region82: #{tpu_custom_call.1} parent=79 // pred_check_branch
          %838 = sbr.rel (%p836) target = $region84
        $region83: #{tpu_custom_call.1} parent=79 // pred_region
          %s839 = sand.u32 %s198, 1
          %s840 = scalar_lea.sflag [#allocation5], %s839
          %s841 = sand.u32 %s198, 1
          %s842 = scalar_lea.vmem [#allocation8], %s841
          %843 = dma.done %s840, 16
        $region84: #{tpu_custom_call.1} parent=79 // pred_fallthru
          _
      $region80: #{tpu_custom_call.1} parent=5 // pred_fallthru
        _
    $region6: #{tpu_custom_call.1} parent=1 // loop_footer
      %s22 = sadd.s32 1, %s18
    $region7: #{tpu_custom_call.1} parent=1 // loop_footer_branch
      %17 = sbr.rel target = $region3
    $region8: #{tpu_custom_call.1} parent=1 // loop_exit
      _
    %844 = vsyncpa [#allocation4], 1
    %s845 = scalar_lea.sflag [#allocation4], 1
    %846 = vsyncpa %s845, 1
    %847 = vsyncpa [#allocation7], 1
    %848 = vsyncpa [#allocation5], 1
    %s849 = scalar_lea.sflag [#allocation5], 1
    %850 = vsyncpa %s849, 1

</llo_original>
